<compile_context>
chip_gen: v6e
topology: v6e:2x2x1
jax: 0.10.0
libtpu: 0.0.40
codegen_flags: <defaults>
</compile_context>

<pallas_src>
import jax
import jax.numpy as jnp
from jax.experimental import pallas as pl
from jax.experimental.pallas import tpu as pltpu

LANE = 128  # vreg lane width; also a safe MXU tile edge on v5e/v6e/v7x


def _round_up(n, m):
    return ((n + m - 1) // m) * m


def _pad_to(a, shape):
    return jnp.pad(a, [(0, s - d) for s, d in zip(shape, a.shape)])


# Layer slab indices: 0=enc1, 1=enc2, 2=mean head, 3=logvar head,
#                     4=dec1, 5=dec2, 6=dec3
def make_vae_kernel(matmul_dtype):
    def vae_kernel(x_ref, eps_ref, w_ref, b_ref,
                   recon_ref, mean_ref, logvar_ref):
        def linear(h, idx):
            # MXU matmul (operands optionally bf16), f32 accumulation + bias.
            return (jnp.dot(h.astype(matmul_dtype),
                            w_ref[idx].astype(matmul_dtype),
                            preferred_element_type=jnp.float32)
                    + b_ref[idx])

        x = x_ref[...]

        # ----- encoder: Linear -> ReLU -> Linear -> ReLU -> {mean, logvar} -----
        h = jnp.maximum(linear(x, 0), 0.0)
        h = jnp.maximum(linear(h, 1), 0.0)
        mean = linear(h, 2)      # separate heads: no in-vreg slice, lane-dense
        logvar = linear(h, 3)
        mean_ref[...] = mean
        logvar_ref[...] = logvar

        # ----- reparameterize: z = eps * exp(0.5 * logvar) + mean (f32 VPU/EUP) -----
        z = eps_ref[...] * jnp.exp(logvar * 0.5) + mean

        # ----- decoder: Linear -> ReLU -> Linear -> ReLU -> Linear -----
        h = jnp.maximum(linear(z, 4), 0.0)
        h = jnp.maximum(linear(h, 5), 0.0)
        recon_ref[...] = linear(h, 6)

    return vae_kernel


def init_params(key, input_dim, hidden_dim, latent_dim):
    """Deterministic synthetic parameters. Weights stored as [in, out]; biases [1, out]."""
    dims_enc = [(input_dim, hidden_dim),
                (hidden_dim, hidden_dim // 2),
                (hidden_dim // 2, latent_dim * 2)]
    dims_dec = [(latent_dim, hidden_dim),
                (hidden_dim, hidden_dim // 2),
                (hidden_dim // 2, input_dim)]
    params = []
    keys = jax.random.split(key, len(dims_enc) + len(dims_dec))
    for k, (fin, fout) in zip(keys, dims_enc + dims_dec):
        kw, kb = jax.random.split(k)
        scale = 1.0 / jnp.sqrt(jnp.float32(fin))
        w = jax.random.uniform(kw, (fin, fout), jnp.float32, -scale, scale)
        b = jax.random.uniform(kb, (1, fout), jnp.float32, -scale, scale)
        params += [w, b]
    return tuple(params)


def pack_params(params, latent_dim, dp):
    """Pad every layer to (dp, dp)/(1, dp) and pack into two slabs (2 DMAs total)."""
    ew1, eb1, ew2, eb2, ew3, eb3, dw1, db1, dw2, db2, dw3, db3 = params
    # Split the fused (mean | logvar) projection into two independent heads.
    w_mean, w_logvar = ew3[:, :latent_dim], ew3[:, latent_dim:]
    b_mean, b_logvar = eb3[:, :latent_dim], eb3[:, latent_dim:]
    ws = [ew1, ew2, w_mean, w_logvar, dw1, dw2, dw3]
    bs = [eb1, eb2, b_mean, b_logvar, db1, db2, db3]
    w_slab = jnp.stack([_pad_to(w, (dp, dp)) for w in ws])    # (7, dp, dp)
    b_slab = jnp.stack([_pad_to(b, (1, dp)) for b in bs])     # (7, 1,  dp)
    return w_slab, b_slab


def vanilla_vae_forward(x, eps, params, *, block_b=128, matmul_dtype=jnp.float32):
    B, input_dim = x.shape
    latent_dim = eps.shape[-1]
    hidden_dim = params[0].shape[1]

    # Common padded feature width (multiple of 128 lanes) and padded batch.
    dp = _round_up(max(input_dim, hidden_dim, hidden_dim // 2, latent_dim), LANE)
    bp = _round_up(B, block_b)

    w_slab, b_slab = pack_params(params, latent_dim, dp)  # one-time host-side prep
    x_p = jnp.zeros((bp, dp), jnp.float32).at[:B, :input_dim].set(x)
    eps_p = jnp.zeros((bp, dp), jnp.float32).at[:B, :latent_dim].set(eps)

    grid = (bp // block_b,)
    act_spec = pl.BlockSpec((block_b, dp), lambda i: (i, 0))           # batch-tiled
    w_spec = pl.BlockSpec(w_slab.shape, lambda i: (0, 0, 0))           # resident
    b_spec = pl.BlockSpec(b_slab.shape, lambda i: (0, 0, 0))           # resident

    n_layers = 7
    cost = pl.CostEstimate(
        flops=2 * bp * dp * dp * n_layers,
        transcendentals=bp * dp,
        bytes_accessed=4 * (x_p.size + eps_p.size + w_slab.size + b_slab.size
                            + 3 * bp * dp),
    )

    recon_p, mean_p, logvar_p = pl.pallas_call(
        make_vae_kernel(matmul_dtype),
        grid=grid,
        in_specs=[act_spec, act_spec, w_spec, b_spec],
        out_specs=(act_spec, act_spec, act_spec),
        out_shape=(
            jax.ShapeDtypeStruct((bp, dp), jnp.float32),   # reconstructed (padded)
            jax.ShapeDtypeStruct((bp, dp), jnp.float32),   # mean (padded)
            jax.ShapeDtypeStruct((bp, dp), jnp.float32),   # logvar (padded)
        ),
        compiler_params=pltpu.CompilerParams(
            dimension_semantics=("parallel",)),            # megacore-shardable on v7x
        cost_estimate=cost,
    )(x_p, eps_p, w_slab, b_slab)

    # Slice padding off outside the kernel (keeps in-kernel stores lane-dense).
    return (recon_p[:B, :input_dim],
            mean_p[:B, :latent_dim],
            logvar_p[:B, :latent_dim])


if __name__ == "__main__":
    # Small feature dims consistent with the module's MLP forward; batch sized
    # to exercise batch tiling (2 grid steps of 128 rows).
    batch = 256
    input_dim = 16
    hidden_dim = 32
    latent_dim = 8

    key = jax.random.PRNGKey(0)
    k_x, k_eps, k_params = jax.random.split(key, 3)

    x = jax.random.normal(k_x, (batch, input_dim), jnp.float32)
    eps = jax.random.normal(k_eps, (batch, latent_dim), jnp.float32)
    params = init_params(k_params, input_dim, hidden_dim, latent_dim)

    reconstructed, mean, logvar = vanilla_vae_forward(x, eps, params)
    jax.block_until_ready((reconstructed, mean, logvar))

    # Pure-JAX reference check (same math, outside Pallas, unpadded f32).
    ew1, eb1, ew2, eb2, ew3, eb3, dw1, db1, dw2, db2, dw3, db3 = params
    h = jnp.maximum(x @ ew1 + eb1, 0.0)
    h = jnp.maximum(h @ ew2 + eb2, 0.0)
    enc = h @ ew3 + eb3
    mean_ref = enc[:, :latent_dim]
    logvar_ref = enc[:, latent_dim:]
    z = eps * jnp.exp(0.5 * logvar_ref) + mean_ref
    h = jnp.maximum(z @ dw1 + db1, 0.0)
    h = jnp.maximum(h @ dw2 + db2, 0.0)
    recon_ref = h @ dw3 + db3

    assert jnp.allclose(reconstructed, recon_ref, atol=1e-4, rtol=1e-4)
    assert jnp.allclose(mean, mean_ref, atol=1e-4, rtol=1e-4)
    assert jnp.allclose(logvar, logvar_ref, atol=1e-4, rtol=1e-4)

    print("KERNEL_OK")
</pallas_src>

<mosaic_0001>
module attributes {stable_mosaic.version = 11 : i64} {
  func.func @vae_kernel(%arg0: i32, %arg1: memref<128x128xf32, #tpu.memory_space<vmem>>, %arg2: memref<128x128xf32, #tpu.memory_space<vmem>>, %arg3: memref<7x128x128xf32, #tpu.memory_space<vmem>>, %arg4: memref<7x1x128xf32, #tpu.memory_space<vmem>>, %arg5: memref<128x128xf32, #tpu.memory_space<vmem>>, %arg6: memref<128x128xf32, #tpu.memory_space<vmem>>, %arg7: memref<128x128xf32, #tpu.memory_space<vmem>>) attributes {dimension_semantics = [#tpu.dimension_semantics<parallel>], iteration_bounds = array<i64: 2>, scalar_prefetch = 0 : i64, scratch_operands = 0 : i64, tpu.core_type = #tpu.core_type<tc>, window_params = [{transform_indices = @transform_0, window_bounds = array<i64: 128, 128>}, {transform_indices = @transform_1, window_bounds = array<i64: 128, 128>}, {pipeline_mode = #tpu.pipeline_mode<synchronous>, transform_indices = @transform_2, window_bounds = array<i64: 7, 128, 128>}, {pipeline_mode = #tpu.pipeline_mode<synchronous>, transform_indices = @transform_3, window_bounds = array<i64: 7, 1, 128>}, {transform_indices = @transform_4, window_bounds = array<i64: 128, 128>}, {transform_indices = @transform_5, window_bounds = array<i64: 128, 128>}, {transform_indices = @transform_6, window_bounds = array<i64: 128, 128>}]} {
    %c0 = arith.constant 0 : index
    %c0_0 = arith.constant 0 : index
    %0 = vector.load %arg1[%c0, %c0_0] : memref<128x128xf32, #tpu.memory_space<vmem>>, vector<128x128xf32>
    %c0_1 = arith.constant 0 : index
    %c0_2 = arith.constant 0 : index
    %c0_3 = arith.constant 0 : index
    %1 = vector.load %arg3[%c0_1, %c0_2, %c0_3] : memref<7x128x128xf32, #tpu.memory_space<vmem>>, vector<1x128x128xf32>
    %2 = vector.shape_cast %1 : vector<1x128x128xf32> to vector<128x128xf32>
    %cst = arith.constant dense<0.000000e+00> : vector<128x128xf32>
    %3 = tpu.matmul %0, %2, %cst {dimension_numbers = #tpu.dot_dimension_numbers<[1], [0], [0], [1], [0, 0, 1, 1], [], []>} : vector<128x128xf32>, vector<128x128xf32>, vector<128x128xf32> -> vector<128x128xf32>
    %c0_4 = arith.constant 0 : index
    %c0_5 = arith.constant 0 : index
    %c0_6 = arith.constant 0 : index
    %4 = vector.load %arg4[%c0_4, %c0_5, %c0_6] : memref<7x1x128xf32, #tpu.memory_space<vmem>>, vector<1x1x128xf32>
    %5 = vector.shape_cast %4 : vector<1x1x128xf32> to vector<1x128xf32>
    %6 = vector.broadcast %5 : vector<1x128xf32> to vector<128x128xf32>
    %7 = arith.addf %3, %6 : vector<128x128xf32>
    %cst_7 = arith.constant 0.000000e+00 : f32
    %8 = vector.broadcast %cst_7 : f32 to vector<128x128xf32>
    %9 = arith.maximumf %7, %8 : vector<128x128xf32>
    %c1 = arith.constant 1 : index
    %c0_8 = arith.constant 0 : index
    %c0_9 = arith.constant 0 : index
    %10 = vector.load %arg3[%c1, %c0_8, %c0_9] : memref<7x128x128xf32, #tpu.memory_space<vmem>>, vector<1x128x128xf32>
    %11 = vector.shape_cast %10 : vector<1x128x128xf32> to vector<128x128xf32>
    %cst_10 = arith.constant dense<0.000000e+00> : vector<128x128xf32>
    %12 = tpu.matmul %9, %11, %cst_10 {dimension_numbers = #tpu.dot_dimension_numbers<[1], [0], [0], [1], [0, 0, 1, 1], [], []>} : vector<128x128xf32>, vector<128x128xf32>, vector<128x128xf32> -> vector<128x128xf32>
    %c1_11 = arith.constant 1 : index
    %c0_12 = arith.constant 0 : index
    %c0_13 = arith.constant 0 : index
    %13 = vector.load %arg4[%c1_11, %c0_12, %c0_13] : memref<7x1x128xf32, #tpu.memory_space<vmem>>, vector<1x1x128xf32>
    %14 = vector.shape_cast %13 : vector<1x1x128xf32> to vector<1x128xf32>
    %15 = vector.broadcast %14 : vector<1x128xf32> to vector<128x128xf32>
    %16 = arith.addf %12, %15 : vector<128x128xf32>
    %cst_14 = arith.constant 0.000000e+00 : f32
    %17 = vector.broadcast %cst_14 : f32 to vector<128x128xf32>
    %18 = arith.maximumf %16, %17 : vector<128x128xf32>
    %c2 = arith.constant 2 : index
    %c0_15 = arith.constant 0 : index
    %c0_16 = arith.constant 0 : index
    %19 = vector.load %arg3[%c2, %c0_15, %c0_16] : memref<7x128x128xf32, #tpu.memory_space<vmem>>, vector<1x128x128xf32>
    %20 = vector.shape_cast %19 : vector<1x128x128xf32> to vector<128x128xf32>
    %cst_17 = arith.constant dense<0.000000e+00> : vector<128x128xf32>
    %21 = tpu.matmul %18, %20, %cst_17 {dimension_numbers = #tpu.dot_dimension_numbers<[1], [0], [0], [1], [0, 0, 1, 1], [], []>} : vector<128x128xf32>, vector<128x128xf32>, vector<128x128xf32> -> vector<128x128xf32>
    %c2_18 = arith.constant 2 : index
    %c0_19 = arith.constant 0 : index
    %c0_20 = arith.constant 0 : index
    %22 = vector.load %arg4[%c2_18, %c0_19, %c0_20] : memref<7x1x128xf32, #tpu.memory_space<vmem>>, vector<1x1x128xf32>
    %23 = vector.shape_cast %22 : vector<1x1x128xf32> to vector<1x128xf32>
    %24 = vector.broadcast %23 : vector<1x128xf32> to vector<128x128xf32>
    %25 = arith.addf %21, %24 : vector<128x128xf32>
    %c3 = arith.constant 3 : index
    %c0_21 = arith.constant 0 : index
    %c0_22 = arith.constant 0 : index
    %26 = vector.load %arg3[%c3, %c0_21, %c0_22] : memref<7x128x128xf32, #tpu.memory_space<vmem>>, vector<1x128x128xf32>
    %27 = vector.shape_cast %26 : vector<1x128x128xf32> to vector<128x128xf32>
    %cst_23 = arith.constant dense<0.000000e+00> : vector<128x128xf32>
    %28 = tpu.matmul %18, %27, %cst_23 {dimension_numbers = #tpu.dot_dimension_numbers<[1], [0], [0], [1], [0, 0, 1, 1], [], []>} : vector<128x128xf32>, vector<128x128xf32>, vector<128x128xf32> -> vector<128x128xf32>
    %c3_24 = arith.constant 3 : index
    %c0_25 = arith.constant 0 : index
    %c0_26 = arith.constant 0 : index
    %29 = vector.load %arg4[%c3_24, %c0_25, %c0_26] : memref<7x1x128xf32, #tpu.memory_space<vmem>>, vector<1x1x128xf32>
    %30 = vector.shape_cast %29 : vector<1x1x128xf32> to vector<1x128xf32>
    %31 = vector.broadcast %30 : vector<1x128xf32> to vector<128x128xf32>
    %32 = arith.addf %28, %31 : vector<128x128xf32>
    %c0_27 = arith.constant 0 : index
    %c0_28 = arith.constant 0 : index
    %33 = vector.load %arg6[%c0_27, %c0_28] : memref<128x128xf32, #tpu.memory_space<vmem>>, vector<128x128xf32>
    tpu.vector_store %arg6[%c0_27, %c0_28], %25 {strides = array<i32>} : memref<128x128xf32, #tpu.memory_space<vmem>>, vector<128x128xf32>,
    %c0_29 = arith.constant 0 : index
    %c0_30 = arith.constant 0 : index
    %34 = vector.load %arg7[%c0_29, %c0_30] : memref<128x128xf32, #tpu.memory_space<vmem>>, vector<128x128xf32>
    tpu.vector_store %arg7[%c0_29, %c0_30], %32 {strides = array<i32>} : memref<128x128xf32, #tpu.memory_space<vmem>>, vector<128x128xf32>,
    %c0_31 = arith.constant 0 : index
    %c0_32 = arith.constant 0 : index
    %35 = vector.load %arg2[%c0_31, %c0_32] : memref<128x128xf32, #tpu.memory_space<vmem>>, vector<128x128xf32>
    %cst_33 = arith.constant 5.000000e-01 : f32
    %36 = vector.broadcast %cst_33 : f32 to vector<128x128xf32>
    %37 = arith.mulf %32, %36 : vector<128x128xf32>
    %38 = math.exp %37 : vector<128x128xf32>
    %39 = arith.mulf %35, %38 : vector<128x128xf32>
    %40 = arith.addf %39, %25 : vector<128x128xf32>
    %c4 = arith.constant 4 : index
    %c0_34 = arith.constant 0 : index
    %c0_35 = arith.constant 0 : index
    %41 = vector.load %arg3[%c4, %c0_34, %c0_35] : memref<7x128x128xf32, #tpu.memory_space<vmem>>, vector<1x128x128xf32>
    %42 = vector.shape_cast %41 : vector<1x128x128xf32> to vector<128x128xf32>
    %cst_36 = arith.constant dense<0.000000e+00> : vector<128x128xf32>
    %43 = tpu.matmul %40, %42, %cst_36 {dimension_numbers = #tpu.dot_dimension_numbers<[1], [0], [0], [1], [0, 0, 1, 1], [], []>} : vector<128x128xf32>, vector<128x128xf32>, vector<128x128xf32> -> vector<128x128xf32>
    %c4_37 = arith.constant 4 : index
    %c0_38 = arith.constant 0 : index
    %c0_39 = arith.constant 0 : index
    %44 = vector.load %arg4[%c4_37, %c0_38, %c0_39] : memref<7x1x128xf32, #tpu.memory_space<vmem>>, vector<1x1x128xf32>
    %45 = vector.shape_cast %44 : vector<1x1x128xf32> to vector<1x128xf32>
    %46 = vector.broadcast %45 : vector<1x128xf32> to vector<128x128xf32>
    %47 = arith.addf %43, %46 : vector<128x128xf32>
    %cst_40 = arith.constant 0.000000e+00 : f32
    %48 = vector.broadcast %cst_40 : f32 to vector<128x128xf32>
    %49 = arith.maximumf %47, %48 : vector<128x128xf32>
    %c5 = arith.constant 5 : index
    %c0_41 = arith.constant 0 : index
    %c0_42 = arith.constant 0 : index
    %50 = vector.load %arg3[%c5, %c0_41, %c0_42] : memref<7x128x128xf32, #tpu.memory_space<vmem>>, vector<1x128x128xf32>
    %51 = vector.shape_cast %50 : vector<1x128x128xf32> to vector<128x128xf32>
    %cst_43 = arith.constant dense<0.000000e+00> : vector<128x128xf32>
    %52 = tpu.matmul %49, %51, %cst_43 {dimension_numbers = #tpu.dot_dimension_numbers<[1], [0], [0], [1], [0, 0, 1, 1], [], []>} : vector<128x128xf32>, vector<128x128xf32>, vector<128x128xf32> -> vector<128x128xf32>
    %c5_44 = arith.constant 5 : index
    %c0_45 = arith.constant 0 : index
    %c0_46 = arith.constant 0 : index
    %53 = vector.load %arg4[%c5_44, %c0_45, %c0_46] : memref<7x1x128xf32, #tpu.memory_space<vmem>>, vector<1x1x128xf32>
    %54 = vector.shape_cast %53 : vector<1x1x128xf32> to vector<1x128xf32>
    %55 = vector.broadcast %54 : vector<1x128xf32> to vector<128x128xf32>
    %56 = arith.addf %52, %55 : vector<128x128xf32>
    %cst_47 = arith.constant 0.000000e+00 : f32
    %57 = vector.broadcast %cst_47 : f32 to vector<128x128xf32>
    %58 = arith.maximumf %56, %57 : vector<128x128xf32>
    %c6 = arith.constant 6 : index
    %c0_48 = arith.constant 0 : index
    %c0_49 = arith.constant 0 : index
    %59 = vector.load %arg3[%c6, %c0_48, %c0_49] : memref<7x128x128xf32, #tpu.memory_space<vmem>>, vector<1x128x128xf32>
    %60 = vector.shape_cast %59 : vector<1x128x128xf32> to vector<128x128xf32>
    %cst_50 = arith.constant dense<0.000000e+00> : vector<128x128xf32>
    %61 = tpu.matmul %58, %60, %cst_50 {dimension_numbers = #tpu.dot_dimension_numbers<[1], [0], [0], [1], [0, 0, 1, 1], [], []>} : vector<128x128xf32>, vector<128x128xf32>, vector<128x128xf32> -> vector<128x128xf32>
    %c6_51 = arith.constant 6 : index
    %c0_52 = arith.constant 0 : index
    %c0_53 = arith.constant 0 : index
    %62 = vector.load %arg4[%c6_51, %c0_52, %c0_53] : memref<7x1x128xf32, #tpu.memory_space<vmem>>, vector<1x1x128xf32>
    %63 = vector.shape_cast %62 : vector<1x1x128xf32> to vector<1x128xf32>
    %64 = vector.broadcast %63 : vector<1x128xf32> to vector<128x128xf32>
    %65 = arith.addf %61, %64 : vector<128x128xf32>
    %c0_54 = arith.constant 0 : index
    %c0_55 = arith.constant 0 : index
    %66 = vector.load %arg5[%c0_54, %c0_55] : memref<128x128xf32, #tpu.memory_space<vmem>>, vector<128x128xf32>
    tpu.vector_store %arg5[%c0_54, %c0_55], %65 {strides = array<i32>} : memref<128x128xf32, #tpu.memory_space<vmem>>, vector<128x128xf32>,
    return
  }
  func.func @transform_0(%arg0: i32) -> (i32, i32) {
    %c0_i32 = arith.constant 0 : i32
    %c0_i32_0 = arith.constant 0 : i32
    return %arg0, %c0_i32 : i32, i32
  }
  func.func @transform_1(%arg0: i32) -> (i32, i32) {
    %c0_i32 = arith.constant 0 : i32
    %c0_i32_0 = arith.constant 0 : i32
    return %arg0, %c0_i32 : i32, i32
  }
  func.func @transform_2(%arg0: i32) -> (i32, i32, i32) {
    %c0_i32 = arith.constant 0 : i32
    %c0_i32_0 = arith.constant 0 : i32
    %c0_i32_1 = arith.constant 0 : i32
    %c0_i32_2 = arith.constant 0 : i32
    return %c0_i32, %c0_i32_0, %c0_i32_1 : i32, i32, i32
  }
  func.func @transform_3(%arg0: i32) -> (i32, i32, i32) {
    %c0_i32 = arith.constant 0 : i32
    %c0_i32_0 = arith.constant 0 : i32
    %c0_i32_1 = arith.constant 0 : i32
    %c0_i32_2 = arith.constant 0 : i32
    return %c0_i32, %c0_i32_0, %c0_i32_1 : i32, i32, i32
  }
  func.func @transform_4(%arg0: i32) -> (i32, i32) {
    %c0_i32 = arith.constant 0 : i32
    %c0_i32_0 = arith.constant 0 : i32
    return %arg0, %c0_i32 : i32, i32
  }
  func.func @transform_5(%arg0: i32) -> (i32, i32) {
    %c0_i32 = arith.constant 0 : i32
    %c0_i32_0 = arith.constant 0 : i32
    return %arg0, %c0_i32 : i32, i32
  }
  func.func @transform_6(%arg0: i32) -> (i32, i32) {
    %c0_i32 = arith.constant 0 : i32
    %c0_i32_0 = arith.constant 0 : i32
    return %arg0, %c0_i32 : i32, i32
  }
}

</mosaic_0001>

<llo_original>
// kernel: tpu_custom_call.1
$region0: #{tpu_custom_call.1}
  #allocation0 [shape = 'u32[]', space=smem, size = 0x4, offset = 0x4, fixed_abs, tag = 'smem constant byte address 0x4 - core index']
  #allocation1 [shape = 'u32[144,128]{1,0:T(1,128)}', space=vmem, size = 0x12000, scoped, tag = 'internal scratch']
  %s0 = inlined_call_operand.hbm [shape: f32[256,128], index: 0, kind: input, shape index: {}]
  %s1 = inlined_call_operand.hbm [shape: f32[256,128], index: 1, kind: input, shape index: {}]
  %s2 = inlined_call_operand.hbm [shape: f32[7,128,128], index: 2, kind: input, shape index: {}]
  %s3 = inlined_call_operand.hbm [shape: f32[7,1,128], index: 3, kind: input, shape index: {}]
  %s4 = inlined_call_operand.hbm [shape: f32[256,128], index: 4, kind: output, shape index: {0}]
  %s5 = inlined_call_operand.hbm [shape: f32[256,128], index: 5, kind: output, shape index: {1}]
  %s6 = inlined_call_operand.hbm [shape: f32[256,128], index: 6, kind: output, shape index: {2}]
  %7 = xla_tuple %s4, %s5, %s6
  %s8 = sld [smem:[#allocation0]]
  $region81: #{tpu_custom_call.1} parent=0
    _
  %s10 = ssub.s32 1, %s8
  %s11 = scalar_select 0, %s10, %s8
  $region1: #{tpu_custom_call.1} parent=0
    #allocation2 [shape = 'u8[131072]{0}', space=vmem, size = 0x20000, scoped, tag = 'input window, operand 0']
    #allocation3 [shape = 's32[2]{0}', space=sflag, size = 0x8, scoped, tag = 'scoped memory for tpu_custom_call.1']
    #allocation4 [shape = 's32[2]{0}', space=sflag, size = 0x8, scoped, tag = 'scoped memory for tpu_custom_call.1']
    #allocation5 [shape = 'u8[131072]{0}', space=vmem, size = 0x20000, scoped, tag = 'input window, operand 1']
    #allocation6 [shape = 's32[2]{0}', space=sflag, size = 0x8, scoped, tag = 'scoped memory for tpu_custom_call.1']
    #allocation7 [shape = 'u8[458752]{0}', space=vmem, size = 0x70000, scoped, tag = 'input window, operand 2, single buffered']
    #allocation8 [shape = 'u8[3584]{0}', space=vmem, size = 0x1000, scoped, tag = 'input window, operand 3, single buffered']
    #allocation9 [shape = 's32[1]{0}', space=sflag, size = 0x4, scoped, tag = 'scoped memory for tpu_custom_call.1']
    #allocation10 [shape = 'u8[131072]{0}', space=vmem, size = 0x20000, scoped, tag = 'output window, operand 0']
    #allocation11 [shape = 'u8[131072]{0}', space=vmem, size = 0x20000, scoped, tag = 'output window, operand 1']
    #allocation12 [shape = 's32[2]{0}', space=sflag, size = 0x8, scoped, tag = 'scoped memory for tpu_custom_call.1']
    #allocation13 [shape = 'u8[131072]{0}', space=vmem, size = 0x20000, scoped, tag = 'output window, operand 2']
    %12 = vsyncpa [#allocation3], 0
    %s13 = scalar_lea.sflag [#allocation3], 1
    %14 = vsyncpa %s13, 0
    %15 = vsyncpa [#allocation6], 0
    %s16 = scalar_lea.sflag [#allocation6], 1
    %17 = vsyncpa %s16, 0
    %18 = vsyncpa [#allocation9], 0
    %19 = vsyncpa [#allocation4], 0
    %s20 = scalar_lea.sflag [#allocation4], 1
    %21 = vsyncpa %s20, 0
    %22 = vsyncpa [#allocation12], 0
    %s23 = scalar_lea.sflag [#allocation12], 1
    %24 = vsyncpa %s23, 0
    loop: start=0, step=1, limit=4
    $region2: #{tpu_custom_call.1} parent=1 // loop_pre_header
      _
    $region3: #{tpu_custom_call.1} parent=1 // loop_header
      %s26 = sphi 0, %s30
      %p27 = scmp.ge.s32.totalorder %s26, 4
      %s36 = sphi 0, %s38
      %s39 = sphi 0, %s36
      %s40 = sphi 0, %s39
      %s56 = sphi 0, %s40
      %s62 = sphi 0, %s64
      %s65 = sphi 0, %s62
      %s66 = sphi 0, %s65
      %s82 = sphi 0, %s66
      %s86 = sphi 0, %s86
      %s88 = sphi 0, %s86
      %s89 = sphi 0, %s88
      %s103 = sphi 0, %s89
      %s107 = sphi 0, %s107
      %s109 = sphi 0, %s107
      %s110 = sphi 0, %s109
      %s124 = sphi 0, %s110
      %s130 = sphi 0, %s132
      %s133 = sphi 0, %s130
      %s134 = sphi 0, %s133
      %s150 = sphi 0, %s134
      %s156 = sphi 0, %s158
      %s159 = sphi 0, %s156
      %s160 = sphi 0, %s159
      %s176 = sphi 0, %s160
      %s182 = sphi 0, %s184
      %s185 = sphi 0, %s182
      %s186 = sphi 0, %s185
      %s202 = sphi 0, %s186
    $region4: #{tpu_custom_call.1} parent=1 // loop_header_branch
      %29 = sbr.rel (%p27) target = $region8
    $region5: #{tpu_custom_call.1} parent=1 // loop_body
      %s31 = ssub.s32 %s26, 1
      %s32 = ssub.s32 %s26, 2
      %s33 = sadd.s32 %s26, 1
      %s34 = ssub.s32 %s26, %s33
      %p35 = scmp.eq.s32.totalorder %s34, 0
      %s37 = sadd.s32 %s36, 1
      %s38 = scalar_select %p35, %s36, %s37
      %p41 = pneg %p35
      %p42 = scmp.eq.s32.totalorder %s26, 1
      %p43 = por %p41, %p42
      %p44 = scmp.ne.s32.totalorder %s36, %s39
      %p45 = scmp.eq.s32.totalorder %s26, 0
      %p46 = por %p44, %p45
      %p47 = scmp.ne.s32.totalorder %s36, %s39
      %p48 = scmp.eq.s32.totalorder %s31, 1
      %p49 = por %p47, %p48
      %p50 = scmp.ne.s32.totalorder %s39, %s40
      %p51 = scmp.eq.s32.totalorder %s31, 0
      %p52 = por %p50, %p51
      %p53 = scmp.ne.s32.totalorder %s39, %s40
      %p54 = scmp.eq.s32.totalorder %s32, 1
      %p55 = por %p53, %p54
      %p57 = scmp.ne.s32.totalorder %s40, %s56
      %p58 = scmp.eq.s32.totalorder %s32, 0
      %p59 = por %p57, %p58
      %s60 = ssub.s32 %s26, %s33
      %p61 = scmp.eq.s32.totalorder %s60, 0
      %s63 = sadd.s32 %s62, 1
      %s64 = scalar_select %p61, %s62, %s63
      %p67 = pneg %p61
      %p68 = scmp.eq.s32.totalorder %s26, 1
      %p69 = por %p67, %p68
      %p70 = scmp.ne.s32.totalorder %s62, %s65
      %p71 = scmp.eq.s32.totalorder %s26, 0
      %p72 = por %p70, %p71
      %p73 = scmp.ne.s32.totalorder %s62, %s65
      %p74 = scmp.eq.s32.totalorder %s31, 1
      %p75 = por %p73, %p74
      %p76 = scmp.ne.s32.totalorder %s65, %s66
      %p77 = scmp.eq.s32.totalorder %s31, 0
      %p78 = por %p76, %p77
      %p79 = scmp.ne.s32.totalorder %s65, %s66
      %p80 = scmp.eq.s32.totalorder %s32, 1
      %p81 = por %p79, %p80
      %p83 = scmp.ne.s32.totalorder %s66, %s82
      %p84 = scmp.eq.s32.totalorder %s32, 0
      %p85 = por %p83, %p84
      %s87 = sadd.s32 %s86, 1
      %p90 = scmp.eq.s32.totalorder %s26, 1
      %p91 = scmp.ne.s32.totalorder %s86, %s88
      %p92 = scmp.eq.s32.totalorder %s26, 0
      %p93 = por %p91, %p92
      %p94 = scmp.ne.s32.totalorder %s86, %s88
      %p95 = scmp.eq.s32.totalorder %s31, 1
      %p96 = por %p94, %p95
      %p97 = scmp.ne.s32.totalorder %s88, %s89
      %p98 = scmp.eq.s32.totalorder %s31, 0
      %p99 = por %p97, %p98
      %p100 = scmp.ne.s32.totalorder %s88, %s89
      %p101 = scmp.eq.s32.totalorder %s32, 1
      %p102 = por %p100, %p101
      %p104 = scmp.ne.s32.totalorder %s89, %s103
      %p105 = scmp.eq.s32.totalorder %s32, 0
      %p106 = por %p104, %p105
      %s108 = sadd.s32 %s107, 1
      %p111 = scmp.eq.s32.totalorder %s26, 1
      %p112 = scmp.ne.s32.totalorder %s107, %s109
      %p113 = scmp.eq.s32.totalorder %s26, 0
      %p114 = por %p112, %p113
      %p115 = scmp.ne.s32.totalorder %s107, %s109
      %p116 = scmp.eq.s32.totalorder %s31, 1
      %p117 = por %p115, %p116
      %p118 = scmp.ne.s32.totalorder %s109, %s110
      %p119 = scmp.eq.s32.totalorder %s31, 0
      %p120 = por %p118, %p119
      %p121 = scmp.ne.s32.totalorder %s109, %s110
      %p122 = scmp.eq.s32.totalorder %s32, 1
      %p123 = por %p121, %p122
      %p125 = scmp.ne.s32.totalorder %s110, %s124
      %p126 = scmp.eq.s32.totalorder %s32, 0
      %p127 = por %p125, %p126
      %s128 = ssub.s32 %s26, %s33
      %p129 = scmp.eq.s32.totalorder %s128, 0
      %s131 = sadd.s32 %s130, 1
      %s132 = scalar_select %p129, %s130, %s131
      %p135 = pneg %p129
      %p136 = scmp.eq.s32.totalorder %s26, 1
      %p137 = por %p135, %p136
      %p138 = scmp.ne.s32.totalorder %s130, %s133
      %p139 = scmp.eq.s32.totalorder %s26, 0
      %p140 = por %p138, %p139
      %p141 = scmp.ne.s32.totalorder %s130, %s133
      %p142 = scmp.eq.s32.totalorder %s31, 1
      %p143 = por %p141, %p142
      %p144 = scmp.ne.s32.totalorder %s133, %s134
      %p145 = scmp.eq.s32.totalorder %s31, 0
      %p146 = por %p144, %p145
      %p147 = scmp.ne.s32.totalorder %s133, %s134
      %p148 = scmp.eq.s32.totalorder %s32, 1
      %p149 = por %p147, %p148
      %p151 = scmp.ne.s32.totalorder %s134, %s150
      %p152 = scmp.eq.s32.totalorder %s32, 0
      %p153 = por %p151, %p152
      %s154 = ssub.s32 %s26, %s33
      %p155 = scmp.eq.s32.totalorder %s154, 0
      %s157 = sadd.s32 %s156, 1
      %s158 = scalar_select %p155, %s156, %s157
      %p161 = pneg %p155
      %p162 = scmp.eq.s32.totalorder %s26, 1
      %p163 = por %p161, %p162
      %p164 = scmp.ne.s32.totalorder %s156, %s159
      %p165 = scmp.eq.s32.totalorder %s26, 0
      %p166 = por %p164, %p165
      %p167 = scmp.ne.s32.totalorder %s156, %s159
      %p168 = scmp.eq.s32.totalorder %s31, 1
      %p169 = por %p167, %p168
      %p170 = scmp.ne.s32.totalorder %s159, %s160
      %p171 = scmp.eq.s32.totalorder %s31, 0
      %p172 = por %p170, %p171
      %p173 = scmp.ne.s32.totalorder %s159, %s160
      %p174 = scmp.eq.s32.totalorder %s32, 1
      %p175 = por %p173, %p174
      %p177 = scmp.ne.s32.totalorder %s160, %s176
      %p178 = scmp.eq.s32.totalorder %s32, 0
      %p179 = por %p177, %p178
      %s180 = ssub.s32 %s26, %s33
      %p181 = scmp.eq.s32.totalorder %s180, 0
      %s183 = sadd.s32 %s182, 1
      %s184 = scalar_select %p181, %s182, %s183
      %p187 = pneg %p181
      %p188 = scmp.eq.s32.totalorder %s26, 1
      %p189 = por %p187, %p188
      %p190 = scmp.ne.s32.totalorder %s182, %s185
      %p191 = scmp.eq.s32.totalorder %s26, 0
      %p192 = por %p190, %p191
      %p193 = scmp.ne.s32.totalorder %s182, %s185
      %p194 = scmp.eq.s32.totalorder %s31, 1
      %p195 = por %p193, %p194
      %p196 = scmp.ne.s32.totalorder %s185, %s186
      %p197 = scmp.eq.s32.totalorder %s31, 0
      %p198 = por %p196, %p197
      %p199 = scmp.ne.s32.totalorder %s185, %s186
      %p200 = scmp.eq.s32.totalorder %s32, 1
      %p201 = por %p199, %p200
      %p203 = scmp.ne.s32.totalorder %s186, %s202
      %p204 = scmp.eq.s32.totalorder %s32, 0
      %p205 = por %p203, %p204
      %p206 = scmp.le.s32.totalorder 1, %s26
      %p207 = scmp.lt.s32.totalorder %s26, 3
      %p208 = pnand %p206, %p207
      %p209 = pneg %p208
      // Predicated region
      $region9: #{tpu_custom_call.1} parent=5 // pred_check
        _
      $region10: #{tpu_custom_call.1} parent=5 // pred_check_branch
        %211 = sbr.rel (%p208) target = $region12
      $region11: #{tpu_custom_call.1} parent=5 // pred_region
        %s212 = ssub.s32 %s26, 1
        // Predicated region
        $region13: #{tpu_custom_call.1} parent=11 // pred_check
          %p213 = pneg %p99
        $region14: #{tpu_custom_call.1} parent=11 // pred_check_branch
          %215 = sbr.rel (%p213) target = $region16
        $region15: #{tpu_custom_call.1} parent=11 // pred_region
          %s217 = ssub.s32 14336, 14336
          %218 = vsyncadd [#allocation6], %s217
          %s219 = sshll.u32 [#allocation7], 4
          %s220 = int_to_ptr.vmem [resolvable:$true] %s219
          %225 = dma.hbm_to_vmem [thread:$0]  %s2, 14336, %s220, [#allocation6], 128, 128, 8
        $region16: #{tpu_custom_call.1} parent=11 // pred_fallthru
          _
        // Predicated region
        $region17: #{tpu_custom_call.1} parent=11 // pred_check
          %p226 = pneg %p120
        $region18: #{tpu_custom_call.1} parent=11 // pred_check_branch
          %228 = sbr.rel (%p226) target = $region20
        $region19: #{tpu_custom_call.1} parent=11 // pred_region
          %s230 = ssub.s32 112, 112
          %231 = vsyncadd [#allocation9], %s230
          %s232 = sshll.u32 [#allocation8], 4
          %s233 = int_to_ptr.vmem [resolvable:$true] %s232
          %238 = dma.hbm_to_vmem [thread:$0]  %s3, 112, %s233, [#allocation9], 16, 16, 1
        $region20: #{tpu_custom_call.1} parent=11 // pred_fallthru
          _
      $region12: #{tpu_custom_call.1} parent=5 // pred_fallthru
        _
      %p239 = scmp.lt.s32.totalorder %s26, 2
      // Predicated region
      $region21: #{tpu_custom_call.1} parent=5 // pred_check
        %p240 = pneg %p239
      $region22: #{tpu_custom_call.1} parent=5 // pred_check_branch
        %242 = sbr.rel (%p240) target = $region24
      $region23: #{tpu_custom_call.1} parent=5 // pred_region
        // Predicated region
        $region25: #{tpu_custom_call.1} parent=23 // pred_check
          %p243 = pneg %p46
        $region26: #{tpu_custom_call.1} parent=23 // pred_check_branch
          %245 = sbr.rel (%p243) target = $region28
        $region27: #{tpu_custom_call.1} parent=23 // pred_region
          %s246 = sand.u32 %s36, 1
          %s247 = scalar_lea.sflag [#allocation3], %s246
          %s248 = sand.u32 %s36, 1
          %s249 = smul.addr %s248, 128
          %s250 = scalar_lea.vmem [#allocation2], %s249
          %s251 = smul.u32 16, %s26
          %s253 = ssub.s32 2048, 2048
          %254 = vsyncadd %s247, %s253
          %s255 = smul.addr %s251, 128
          %s256 = scalar_lea.hbm %s0, %s255
          %s257 = sshll.u32 %s250, 4
          %s258 = int_to_ptr.vmem [resolvable:$true] %s257
          %263 = dma.hbm_to_vmem [thread:$0]  %s256, 2048, %s258, %s247, 128, 128, 8
        $region28: #{tpu_custom_call.1} parent=23 // pred_fallthru
          _
        // Predicated region
        $region29: #{tpu_custom_call.1} parent=23 // pred_check
          %p264 = pneg %p72
        $region30: #{tpu_custom_call.1} parent=23 // pred_check_branch
          %266 = sbr.rel (%p264) target = $region32
        $region31: #{tpu_custom_call.1} parent=23 // pred_region
          %s267 = sand.u32 %s26, 1
          %s268 = scalar_lea.sflag [#allocation6], %s267
          %s269 = sand.u32 %s62, 1
          %s270 = smul.addr %s269, 128
          %s271 = scalar_lea.vmem [#allocation5], %s270
          %s272 = smul.u32 16, %s26
          %s274 = ssub.s32 2048, 2048
          %275 = vsyncadd %s268, %s274
          %s276 = smul.addr %s272, 128
          %s277 = scalar_lea.hbm %s1, %s276
          %s278 = sshll.u32 %s271, 4
          %s279 = int_to_ptr.vmem [resolvable:$true] %s278
          %284 = dma.hbm_to_vmem [thread:$0]  %s277, 2048, %s279, %s268, 128, 128, 8
        $region32: #{tpu_custom_call.1} parent=23 // pred_fallthru
          _
      $region24: #{tpu_custom_call.1} parent=5 // pred_fallthru
        _
      %p285 = scmp.le.s32.totalorder 1, %s26
      %p286 = scmp.lt.s32.totalorder %s26, 3
      %p287 = pnand %p285, %p286
      %p288 = pneg %p287
      // Predicated region
      $region33: #{tpu_custom_call.1} parent=5 // pred_check
        _
      $region34: #{tpu_custom_call.1} parent=5 // pred_check_branch
        %290 = sbr.rel (%p287) target = $region36
      $region35: #{tpu_custom_call.1} parent=5 // pred_region
        %s291 = ssub.s32 %s26, 1
        %s292 = sand.u32 %s39, 1
        %s293 = scalar_lea.sflag [#allocation3], %s292
        %s294 = sand.u32 %s39, 1
        %s295 = smul.addr %s294, 128
        %s296 = scalar_lea.vmem [#allocation2], %s295
        // Predicated region
        $region37: #{tpu_custom_call.1} parent=35 // pred_check
          %p297 = pneg %p52
        $region38: #{tpu_custom_call.1} parent=35 // pred_check_branch
          %299 = sbr.rel (%p297) target = $region40
        $region39: #{tpu_custom_call.1} parent=35 // pred_region
          %300 = dma.done %s293, 2048
        $region40: #{tpu_custom_call.1} parent=35 // pred_fallthru
          _
        %s301 = sand.u32 %s31, 1
        %s302 = scalar_lea.sflag [#allocation6], %s301
        %s303 = sand.u32 %s65, 1
        %s304 = smul.addr %s303, 128
        %s305 = scalar_lea.vmem [#allocation5], %s304
        // Predicated region
        $region41: #{tpu_custom_call.1} parent=35 // pred_check
          %p306 = pneg %p78
        $region42: #{tpu_custom_call.1} parent=35 // pred_check_branch
          %308 = sbr.rel (%p306) target = $region44
        $region43: #{tpu_custom_call.1} parent=35 // pred_region
          %309 = dma.done %s302, 2048
        $region44: #{tpu_custom_call.1} parent=35 // pred_fallthru
          _
        // Predicated region
        $region45: #{tpu_custom_call.1} parent=35 // pred_check
          %p310 = pneg %p99
        $region46: #{tpu_custom_call.1} parent=35 // pred_check_branch
          %312 = sbr.rel (%p310) target = $region48
        $region47: #{tpu_custom_call.1} parent=35 // pred_region
          %313 = dma.done [#allocation6], 14336
        $region48: #{tpu_custom_call.1} parent=35 // pred_fallthru
          _
        // Predicated region
        $region49: #{tpu_custom_call.1} parent=35 // pred_check
          %p314 = pneg %p120
        $region50: #{tpu_custom_call.1} parent=35 // pred_check_branch
          %316 = sbr.rel (%p314) target = $region52
        $region51: #{tpu_custom_call.1} parent=35 // pred_region
          %317 = dma.done [#allocation9], 112
        $region52: #{tpu_custom_call.1} parent=35 // pred_fallthru
          _
        %s318 = sand.u32 %s39, 1
        %s319 = scalar_lea.sflag [#allocation3], %s318
        %s320 = sand.u32 %s39, 1
        %s321 = smul.addr %s320, 128
        %s322 = scalar_lea.vmem [#allocation2], %s321
        %p323 = pneg %p52
        %p324 = pneg %p49
        %s325 = sand.u32 %s31, 1
        %s326 = scalar_lea.sflag [#allocation6], %s325
        %s327 = sand.u32 %s65, 1
        %s328 = smul.addr %s327, 128
        %s329 = scalar_lea.vmem [#allocation5], %s328
        %p330 = pneg %p78
        %p331 = pneg %p75
        %p332 = pneg %p99
        %p333 = pneg %p96
        %p334 = pneg %p120
        %p335 = pneg %p117
        %p336 = pneg %p146
        %p337 = pneg %p143
        %s338 = sand.u32 %s133, 1
        %s339 = scalar_lea.sflag [#allocation4], %s338
        %s340 = sand.u32 %s133, 1
        %s341 = smul.addr %s340, 128
        %s342 = scalar_lea.vmem [#allocation10], %s341
        %p343 = pneg %p172
        %p344 = pneg %p169
        %s345 = sand.u32 %s31, 1
        %s346 = scalar_lea.sflag [#allocation12], %s345
        %s347 = sand.u32 %s159, 1
        %s348 = smul.addr %s347, 128
        %s349 = scalar_lea.vmem [#allocation11], %s348
        %p350 = pneg %p198
        %p351 = pneg %p195
        %s352 = sand.u32 %s31, 1
        %s353 = scalar_lea.sflag [#allocation12], %s352
        %s354 = sand.u32 %s185, 1
        %s355 = smul.addr %s354, 128
        %s356 = scalar_lea.vmem [#allocation13], %s355
        %s357 = smul.u32 16, %s31
        %s358 = smul.u32 16, %s31
        %s359 = smul.u32 16, %s31
        %s360 = smul.u32 16, %s31
        %s361 = smul.u32 16, %s31
        %v362 = vld [vmem:[%s296] sm:$0xff]
        %v363 = vld [vmem:[%s296 + $0x8] sm:$0xff]
        %v364 = vld [vmem:[%s296 + $0x10] sm:$0xff]
        %v365 = vld [vmem:[%s296 + $0x18] sm:$0xff]
        %v366 = vld [vmem:[%s296 + $0x20] sm:$0xff]
        %v367 = vld [vmem:[%s296 + $0x28] sm:$0xff]
        %v368 = vld [vmem:[%s296 + $0x30] sm:$0xff]
        %v369 = vld [vmem:[%s296 + $0x38] sm:$0xff]
        %v370 = vld [vmem:[%s296 + $0x40] sm:$0xff]
        %v371 = vld [vmem:[%s296 + $0x48] sm:$0xff]
        %v372 = vld [vmem:[%s296 + $0x50] sm:$0xff]
        %v373 = vld [vmem:[%s296 + $0x58] sm:$0xff]
        %v374 = vld [vmem:[%s296 + $0x60] sm:$0xff]
        %v375 = vld [vmem:[%s296 + $0x68] sm:$0xff]
        %v376 = vld [vmem:[%s296 + $0x70] sm:$0xff]
        %v377 = vld [vmem:[%s296 + $0x78] sm:$0xff]
        %v378 = vld [vmem:[#allocation7] sm:$0xff]
        %v379 = vld [vmem:[#allocation7 + $0x8] sm:$0xff]
        %v380 = vld [vmem:[#allocation7 + $0x10] sm:$0xff]
        %v381 = vld [vmem:[#allocation7 + $0x18] sm:$0xff]
        %v382 = vld [vmem:[#allocation7 + $0x20] sm:$0xff]
        %v383 = vld [vmem:[#allocation7 + $0x28] sm:$0xff]
        %v384 = vld [vmem:[#allocation7 + $0x30] sm:$0xff]
        %v385 = vld [vmem:[#allocation7 + $0x38] sm:$0xff]
        %v386 = vld [vmem:[#allocation7 + $0x40] sm:$0xff]
        %v387 = vld [vmem:[#allocation7 + $0x48] sm:$0xff]
        %v388 = vld [vmem:[#allocation7 + $0x50] sm:$0xff]
        %v389 = vld [vmem:[#allocation7 + $0x58] sm:$0xff]
        %v390 = vld [vmem:[#allocation7 + $0x60] sm:$0xff]
        %v391 = vld [vmem:[#allocation7 + $0x68] sm:$0xff]
        %v392 = vld [vmem:[#allocation7 + $0x70] sm:$0xff]
        %v393 = vld [vmem:[#allocation7 + $0x78] sm:$0xff]
        %v394 = vld [vmem:[#allocation8] sm:$0x1]
        %v396 = vlaneseq
        %v397 = vshrl.u32 %v396, 7
        %v398 = vsub.s32 0, %v397
        %v399 = vrot.slane %v394, %v398
        %401 = vmatprep.subr.mxu0 0.0
        %402 = vmatpush1.msra.mxu0 %v393
        %403 = vmatprep.subr.mxu0 0.0
        %404 = vmatpush1.msra.mxu0 %v392
        %405 = vmatprep.subr.mxu0 0.0
        %406 = vmatpush1.msra.mxu0 %v391
        %407 = vmatprep.subr.mxu0 0.0
        %408 = vmatpush1.msra.mxu0 %v390
        %409 = vmatprep.subr.mxu0 0.0
        %410 = vmatpush1.msra.mxu0 %v389
        %411 = vmatprep.subr.mxu0 0.0
        %412 = vmatpush1.msra.mxu0 %v388
        %413 = vmatprep.subr.mxu0 0.0
        %414 = vmatpush1.msra.mxu0 %v387
        %415 = vmatprep.subr.mxu0 0.0
        %416 = vmatpush1.msra.mxu0 %v386
        %417 = vmatprep.subr.mxu0 0.0
        %418 = vmatpush1.msra.mxu0 %v385
        %419 = vmatprep.subr.mxu0 0.0
        %420 = vmatpush1.msra.mxu0 %v384
        %421 = vmatprep.subr.mxu0 0.0
        %422 = vmatpush1.msra.mxu0 %v383
        %423 = vmatprep.subr.mxu0 0.0
        %424 = vmatpush1.msra.mxu0 %v382
        %425 = vmatprep.subr.mxu0 0.0
        %426 = vmatpush1.msra.mxu0 %v381
        %427 = vmatprep.subr.mxu0 0.0
        %428 = vmatpush1.msra.mxu0 %v380
        %429 = vmatprep.subr.mxu0 0.0
        %430 = vmatpush1.msra.mxu0 %v379
        %431 = vmatprep.subr.mxu0 0.0
        %432 = vmatpush1.msra.mxu0 %v378
        %433 = vmatprep.subr.mxu0 0.0
        %434 = vmatpush2.msra.mxu0 0.0
        %435 = vmatprep.subr.mxu0 0.0
        %436 = vmatpush2.msra.mxu0 0.0
        %437 = vmatprep.subr.mxu0 0.0
        %438 = vmatpush2.msra.mxu0 0.0
        %439 = vmatprep.subr.mxu0 0.0
        %440 = vmatpush2.msra.mxu0 0.0
        %441 = vmatprep.subr.mxu0 0.0
        %442 = vmatpush2.msra.mxu0 0.0
        %443 = vmatprep.subr.mxu0 0.0
        %444 = vmatpush2.msra.mxu0 0.0
        %445 = vmatprep.subr.mxu0 0.0
        %446 = vmatpush2.msra.mxu0 0.0
        %447 = vmatprep.subr.mxu0 0.0
        %448 = vmatpush2.msra.mxu0 0.0
        %449 = vmatprep.subr.mxu0 0.0
        %450 = vmatpush2.msra.mxu0 0.0
        %451 = vmatprep.subr.mxu0 0.0
        %452 = vmatpush2.msra.mxu0 0.0
        %453 = vmatprep.subr.mxu0 0.0
        %454 = vmatpush2.msra.mxu0 0.0
        %455 = vmatprep.subr.mxu0 0.0
        %456 = vmatpush2.msra.mxu0 0.0
        %457 = vmatprep.subr.mxu0 0.0
        %458 = vmatpush2.msra.mxu0 0.0
        %459 = vmatprep.subr.mxu0 0.0
        %460 = vmatpush2.msra.mxu0 0.0
        %461 = vmatprep.subr.mxu0 0.0
        %462 = vmatpush2.msra.mxu0 0.0
        %463 = vmatprep.subr.mxu0 0.0
        %464 = vmatpush2.msra.mxu0 0.0
        %465 = vmatprep.mubr.f32.mxu0 0.0
        %466 = vmatmul.mubr.f32.gmra.mxu0 %v362
        %v467 = vpop.f32.mrf.mxu0
        %v468 = vadd.f32 %v399, %v467
        %v469 = vpop.f32.mrf.mxu0
        %470 = vmatprep.mubr.f32.mxu0 0.0
        %471 = vmatmul.mubr.f32.gmra.mxu0 %v363
        %v472 = vpop.f32.mrf.mxu0
        %v473 = vadd.f32 %v399, %v472
        %v474 = vpop.f32.mrf.mxu0
        %475 = vmatprep.mubr.f32.mxu0 0.0
        %476 = vmatmul.mubr.f32.gmra.mxu0 %v364
        %v477 = vpop.f32.mrf.mxu0
        %v478 = vadd.f32 %v399, %v477
        %v479 = vpop.f32.mrf.mxu0
        %480 = vmatprep.mubr.f32.mxu0 0.0
        %481 = vmatmul.mubr.f32.gmra.mxu0 %v365
        %v482 = vpop.f32.mrf.mxu0
        %v483 = vadd.f32 %v399, %v482
        %v484 = vpop.f32.mrf.mxu0
        %485 = vmatprep.mubr.f32.mxu0 0.0
        %486 = vmatmul.mubr.f32.gmra.mxu0 %v366
        %v487 = vpop.f32.mrf.mxu0
        %v488 = vadd.f32 %v399, %v487
        %v489 = vpop.f32.mrf.mxu0
        %490 = vmatprep.mubr.f32.mxu0 0.0
        %491 = vmatmul.mubr.f32.gmra.mxu0 %v367
        %v492 = vpop.f32.mrf.mxu0
        %v493 = vadd.f32 %v399, %v492
        %v494 = vpop.f32.mrf.mxu0
        %495 = vmatprep.mubr.f32.mxu0 0.0
        %496 = vmatmul.mubr.f32.gmra.mxu0 %v368
        %v497 = vpop.f32.mrf.mxu0
        %v498 = vadd.f32 %v399, %v497
        %v499 = vpop.f32.mrf.mxu0
        %500 = vmatprep.mubr.f32.mxu0 0.0
        %501 = vmatmul.mubr.f32.gmra.mxu0 %v369
        %v502 = vpop.f32.mrf.mxu0
        %v503 = vadd.f32 %v399, %v502
        %v504 = vpop.f32.mrf.mxu0
        %505 = vmatprep.mubr.f32.mxu0 0.0
        %506 = vmatmul.mubr.f32.gmra.mxu0 %v370
        %v507 = vpop.f32.mrf.mxu0
        %v508 = vadd.f32 %v399, %v507
        %v509 = vpop.f32.mrf.mxu0
        %510 = vmatprep.mubr.f32.mxu0 0.0
        %511 = vmatmul.mubr.f32.gmra.mxu0 %v371
        %v512 = vpop.f32.mrf.mxu0
        %v513 = vadd.f32 %v399, %v512
        %v514 = vpop.f32.mrf.mxu0
        %515 = vmatprep.mubr.f32.mxu0 0.0
        %516 = vmatmul.mubr.f32.gmra.mxu0 %v372
        %v517 = vpop.f32.mrf.mxu0
        %v518 = vadd.f32 %v399, %v517
        %v519 = vpop.f32.mrf.mxu0
        %520 = vmatprep.mubr.f32.mxu0 0.0
        %521 = vmatmul.mubr.f32.gmra.mxu0 %v373
        %v522 = vpop.f32.mrf.mxu0
        %v523 = vadd.f32 %v399, %v522
        %v524 = vpop.f32.mrf.mxu0
        %525 = vmatprep.mubr.f32.mxu0 0.0
        %526 = vmatmul.mubr.f32.gmra.mxu0 %v374
        %v527 = vpop.f32.mrf.mxu0
        %v528 = vadd.f32 %v399, %v527
        %v529 = vpop.f32.mrf.mxu0
        %530 = vmatprep.mubr.f32.mxu0 0.0
        %531 = vmatmul.mubr.f32.gmra.mxu0 %v375
        %v532 = vpop.f32.mrf.mxu0
        %v533 = vadd.f32 %v399, %v532
        %v534 = vpop.f32.mrf.mxu0
        %535 = vmatprep.mubr.f32.mxu0 0.0
        %536 = vmatmul.mubr.f32.gmra.mxu0 %v376
        %v537 = vpop.f32.mrf.mxu0
        %v538 = vadd.f32 %v399, %v537
        %v539 = vpop.f32.mrf.mxu0
        %540 = vmatprep.mubr.f32.mxu0 0.0
        %541 = vmatmul.mubr.f32.gmra.mxu0 %v377
        %v542 = vpop.f32.mrf.mxu0
        %v543 = vadd.f32 %v399, %v542
        %v544 = vpop.f32.mrf.mxu0
        %545 = vdwg.mxu0
        %v546 = vmax.f32 %v468, 0.0
        %v547 = vmax.f32 %v473, 0.0
        %v548 = vmax.f32 %v478, 0.0
        %v549 = vmax.f32 %v483, 0.0
        %v550 = vmax.f32 %v488, 0.0
        %v551 = vmax.f32 %v493, 0.0
        %v552 = vmax.f32 %v498, 0.0
        %v553 = vmax.f32 %v503, 0.0
        %v554 = vmax.f32 %v508, 0.0
        %v555 = vmax.f32 %v513, 0.0
        %v556 = vmax.f32 %v518, 0.0
        %v557 = vmax.f32 %v523, 0.0
        %v558 = vmax.f32 %v528, 0.0
        %v559 = vmax.f32 %v533, 0.0
        %v560 = vmax.f32 %v538, 0.0
        %v561 = vmax.f32 %v543, 0.0
        %s562 = scalar_lea.vmem [#allocation7], 128
        %v563 = vld [vmem:[%s562] sm:$0xff]
        %v564 = vld [vmem:[%s562 + $0x8] sm:$0xff]
        %v565 = vld [vmem:[%s562 + $0x10] sm:$0xff]
        %v566 = vld [vmem:[%s562 + $0x18] sm:$0xff]
        %v567 = vld [vmem:[%s562 + $0x20] sm:$0xff]
        %v568 = vld [vmem:[%s562 + $0x28] sm:$0xff]
        %v569 = vld [vmem:[%s562 + $0x30] sm:$0xff]
        %v570 = vld [vmem:[%s562 + $0x38] sm:$0xff]
        %v571 = vld [vmem:[%s562 + $0x40] sm:$0xff]
        %v572 = vld [vmem:[%s562 + $0x48] sm:$0xff]
        %v573 = vld [vmem:[%s562 + $0x50] sm:$0xff]
        %v574 = vld [vmem:[%s562 + $0x58] sm:$0xff]
        %v575 = vld [vmem:[%s562 + $0x60] sm:$0xff]
        %v576 = vld [vmem:[%s562 + $0x68] sm:$0xff]
        %v577 = vld [vmem:[%s562 + $0x70] sm:$0xff]
        %v578 = vld [vmem:[%s562 + $0x78] sm:$0xff]
        %s579 = scalar_lea.vmem [#allocation8], 1
        %v580 = vld [vmem:[%s579] sm:$0x1]
        %v582 = vlaneseq
        %v583 = vshrl.u32 %v582, 7
        %v584 = vsub.s32 0, %v583
        %v585 = vrot.slane %v580, %v584
        %587 = vmatprep.subr.mxu0 0.0
        %588 = vmatpush1.msra.mxu0 %v578
        %589 = vmatprep.subr.mxu0 0.0
        %590 = vmatpush1.msra.mxu0 %v577
        %591 = vmatprep.subr.mxu0 0.0
        %592 = vmatpush1.msra.mxu0 %v576
        %593 = vmatprep.subr.mxu0 0.0
        %594 = vmatpush1.msra.mxu0 %v575
        %595 = vmatprep.subr.mxu0 0.0
        %596 = vmatpush1.msra.mxu0 %v574
        %597 = vmatprep.subr.mxu0 0.0
        %598 = vmatpush1.msra.mxu0 %v573
        %599 = vmatprep.subr.mxu0 0.0
        %600 = vmatpush1.msra.mxu0 %v572
        %601 = vmatprep.subr.mxu0 0.0
        %602 = vmatpush1.msra.mxu0 %v571
        %603 = vmatprep.subr.mxu0 0.0
        %604 = vmatpush1.msra.mxu0 %v570
        %605 = vmatprep.subr.mxu0 0.0
        %606 = vmatpush1.msra.mxu0 %v569
        %607 = vmatprep.subr.mxu0 0.0
        %608 = vmatpush1.msra.mxu0 %v568
        %609 = vmatprep.subr.mxu0 0.0
        %610 = vmatpush1.msra.mxu0 %v567
        %611 = vmatprep.subr.mxu0 0.0
        %612 = vmatpush1.msra.mxu0 %v566
        %613 = vmatprep.subr.mxu0 0.0
        %614 = vmatpush1.msra.mxu0 %v565
        %615 = vmatprep.subr.mxu0 0.0
        %616 = vmatpush1.msra.mxu0 %v564
        %617 = vmatprep.subr.mxu0 0.0
        %618 = vmatpush1.msra.mxu0 %v563
        %619 = vmatprep.subr.mxu0 0.0
        %620 = vmatpush2.msra.mxu0 0.0
        %621 = vmatprep.subr.mxu0 0.0
        %622 = vmatpush2.msra.mxu0 0.0
        %623 = vmatprep.subr.mxu0 0.0
        %624 = vmatpush2.msra.mxu0 0.0
        %625 = vmatprep.subr.mxu0 0.0
        %626 = vmatpush2.msra.mxu0 0.0
        %627 = vmatprep.subr.mxu0 0.0
        %628 = vmatpush2.msra.mxu0 0.0
        %629 = vmatprep.subr.mxu0 0.0
        %630 = vmatpush2.msra.mxu0 0.0
        %631 = vmatprep.subr.mxu0 0.0
        %632 = vmatpush2.msra.mxu0 0.0
        %633 = vmatprep.subr.mxu0 0.0
        %634 = vmatpush2.msra.mxu0 0.0
        %635 = vmatprep.subr.mxu0 0.0
        %636 = vmatpush2.msra.mxu0 0.0
        %637 = vmatprep.subr.mxu0 0.0
        %638 = vmatpush2.msra.mxu0 0.0
        %639 = vmatprep.subr.mxu0 0.0
        %640 = vmatpush2.msra.mxu0 0.0
        %641 = vmatprep.subr.mxu0 0.0
        %642 = vmatpush2.msra.mxu0 0.0
        %643 = vmatprep.subr.mxu0 0.0
        %644 = vmatpush2.msra.mxu0 0.0
        %645 = vmatprep.subr.mxu0 0.0
        %646 = vmatpush2.msra.mxu0 0.0
        %647 = vmatprep.subr.mxu0 0.0
        %648 = vmatpush2.msra.mxu0 0.0
        %649 = vmatprep.subr.mxu0 0.0
        %650 = vmatpush2.msra.mxu0 0.0
        %651 = vmatprep.mubr.f32.mxu0 0.0
        %652 = vmatmul.mubr.f32.gmra.mxu0 %v546
        %v653 = vpop.f32.mrf.mxu0
        %v654 = vadd.f32 %v585, %v653
        %v655 = vpop.f32.mrf.mxu0
        %656 = vmatprep.mubr.f32.mxu0 0.0
        %657 = vmatmul.mubr.f32.gmra.mxu0 %v547
        %v658 = vpop.f32.mrf.mxu0
        %v659 = vadd.f32 %v585, %v658
        %v660 = vpop.f32.mrf.mxu0
        %661 = vmatprep.mubr.f32.mxu0 0.0
        %662 = vmatmul.mubr.f32.gmra.mxu0 %v548
        %v663 = vpop.f32.mrf.mxu0
        %v664 = vadd.f32 %v585, %v663
        %v665 = vpop.f32.mrf.mxu0
        %666 = vmatprep.mubr.f32.mxu0 0.0
        %667 = vmatmul.mubr.f32.gmra.mxu0 %v549
        %v668 = vpop.f32.mrf.mxu0
        %v669 = vadd.f32 %v585, %v668
        %v670 = vpop.f32.mrf.mxu0
        %671 = vmatprep.mubr.f32.mxu0 0.0
        %672 = vmatmul.mubr.f32.gmra.mxu0 %v550
        %v673 = vpop.f32.mrf.mxu0
        %v674 = vadd.f32 %v585, %v673
        %v675 = vpop.f32.mrf.mxu0
        %676 = vmatprep.mubr.f32.mxu0 0.0
        %677 = vmatmul.mubr.f32.gmra.mxu0 %v551
        %v678 = vpop.f32.mrf.mxu0
        %v679 = vadd.f32 %v585, %v678
        %v680 = vpop.f32.mrf.mxu0
        %681 = vmatprep.mubr.f32.mxu0 0.0
        %682 = vmatmul.mubr.f32.gmra.mxu0 %v552
        %v683 = vpop.f32.mrf.mxu0
        %v684 = vadd.f32 %v585, %v683
        %v685 = vpop.f32.mrf.mxu0
        %686 = vmatprep.mubr.f32.mxu0 0.0
        %687 = vmatmul.mubr.f32.gmra.mxu0 %v553
        %v688 = vpop.f32.mrf.mxu0
        %v689 = vadd.f32 %v585, %v688
        %v690 = vpop.f32.mrf.mxu0
        %691 = vmatprep.mubr.f32.mxu0 0.0
        %692 = vmatmul.mubr.f32.gmra.mxu0 %v554
        %v693 = vpop.f32.mrf.mxu0
        %v694 = vadd.f32 %v585, %v693
        %v695 = vpop.f32.mrf.mxu0
        %696 = vmatprep.mubr.f32.mxu0 0.0
        %697 = vmatmul.mubr.f32.gmra.mxu0 %v555
        %v698 = vpop.f32.mrf.mxu0
        %v699 = vadd.f32 %v585, %v698
        %v700 = vpop.f32.mrf.mxu0
        %701 = vmatprep.mubr.f32.mxu0 0.0
        %702 = vmatmul.mubr.f32.gmra.mxu0 %v556
        %v703 = vpop.f32.mrf.mxu0
        %v704 = vadd.f32 %v585, %v703
        %v705 = vpop.f32.mrf.mxu0
        %706 = vmatprep.mubr.f32.mxu0 0.0
        %707 = vmatmul.mubr.f32.gmra.mxu0 %v557
        %v708 = vpop.f32.mrf.mxu0
        %v709 = vadd.f32 %v585, %v708
        %v710 = vpop.f32.mrf.mxu0
        %711 = vmatprep.mubr.f32.mxu0 0.0
        %712 = vmatmul.mubr.f32.gmra.mxu0 %v558
        %v713 = vpop.f32.mrf.mxu0
        %v714 = vadd.f32 %v585, %v713
        %v715 = vpop.f32.mrf.mxu0
        %716 = vmatprep.mubr.f32.mxu0 0.0
        %717 = vmatmul.mubr.f32.gmra.mxu0 %v559
        %v718 = vpop.f32.mrf.mxu0
        %v719 = vadd.f32 %v585, %v718
        %v720 = vpop.f32.mrf.mxu0
        %721 = vmatprep.mubr.f32.mxu0 0.0
        %722 = vmatmul.mubr.f32.gmra.mxu0 %v560
        %v723 = vpop.f32.mrf.mxu0
        %v724 = vadd.f32 %v585, %v723
        %v725 = vpop.f32.mrf.mxu0
        %726 = vmatprep.mubr.f32.mxu0 0.0
        %727 = vmatmul.mubr.f32.gmra.mxu0 %v561
        %v728 = vpop.f32.mrf.mxu0
        %v729 = vadd.f32 %v585, %v728
        %v730 = vpop.f32.mrf.mxu0
        %731 = vdwg.mxu0
        %v732 = vmax.f32 %v654, 0.0
        %v733 = vmax.f32 %v659, 0.0
        %v734 = vmax.f32 %v664, 0.0
        %v735 = vmax.f32 %v669, 0.0
        %v736 = vmax.f32 %v674, 0.0
        %v737 = vmax.f32 %v679, 0.0
        %v738 = vmax.f32 %v684, 0.0
        %v739 = vmax.f32 %v689, 0.0
        %v740 = vmax.f32 %v694, 0.0
        %v741 = vmax.f32 %v699, 0.0
        %v742 = vmax.f32 %v704, 0.0
        %v743 = vmax.f32 %v709, 0.0
        %v744 = vmax.f32 %v714, 0.0
        %v745 = vmax.f32 %v719, 0.0
        %v746 = vmax.f32 %v724, 0.0
        %v747 = vmax.f32 %v729, 0.0
        %s748 = scalar_lea.vmem [#allocation7], 256
        %v749 = vld [vmem:[%s748] sm:$0xff]
        %v750 = vld [vmem:[%s748 + $0x8] sm:$0xff]
        %v751 = vld [vmem:[%s748 + $0x10] sm:$0xff]
        %v752 = vld [vmem:[%s748 + $0x18] sm:$0xff]
        %v753 = vld [vmem:[%s748 + $0x20] sm:$0xff]
        %v754 = vld [vmem:[%s748 + $0x28] sm:$0xff]
        %v755 = vld [vmem:[%s748 + $0x30] sm:$0xff]
        %v756 = vld [vmem:[%s748 + $0x38] sm:$0xff]
        %v757 = vld [vmem:[%s748 + $0x40] sm:$0xff]
        %v758 = vld [vmem:[%s748 + $0x48] sm:$0xff]
        %v759 = vld [vmem:[%s748 + $0x50] sm:$0xff]
        %v760 = vld [vmem:[%s748 + $0x58] sm:$0xff]
        %v761 = vld [vmem:[%s748 + $0x60] sm:$0xff]
        %v762 = vld [vmem:[%s748 + $0x68] sm:$0xff]
        %v763 = vld [vmem:[%s748 + $0x70] sm:$0xff]
        %v764 = vld [vmem:[%s748 + $0x78] sm:$0xff]
        %s765 = scalar_lea.vmem [#allocation8], 2
        %v766 = vld [vmem:[%s765] sm:$0x1]
        %v768 = vlaneseq
        %v769 = vshrl.u32 %v768, 7
        %v770 = vsub.s32 0, %v769
        %v771 = vrot.slane %v766, %v770
        %773 = vmatprep.subr.mxu0 0.0
        %774 = vmatpush1.msra.mxu0 %v764
        %775 = vmatprep.subr.mxu0 0.0
        %776 = vmatpush1.msra.mxu0 %v763
        %777 = vmatprep.subr.mxu0 0.0
        %778 = vmatpush1.msra.mxu0 %v762
        %779 = vmatprep.subr.mxu0 0.0
        %780 = vmatpush1.msra.mxu0 %v761
        %781 = vmatprep.subr.mxu0 0.0
        %782 = vmatpush1.msra.mxu0 %v760
        %783 = vmatprep.subr.mxu0 0.0
        %784 = vmatpush1.msra.mxu0 %v759
        %785 = vmatprep.subr.mxu0 0.0
        %786 = vmatpush1.msra.mxu0 %v758
        %787 = vmatprep.subr.mxu0 0.0
        %788 = vmatpush1.msra.mxu0 %v757
        %789 = vmatprep.subr.mxu0 0.0
        %790 = vmatpush1.msra.mxu0 %v756
        %791 = vmatprep.subr.mxu0 0.0
        %792 = vmatpush1.msra.mxu0 %v755
        %793 = vmatprep.subr.mxu0 0.0
        %794 = vmatpush1.msra.mxu0 %v754
        %795 = vmatprep.subr.mxu0 0.0
        %796 = vmatpush1.msra.mxu0 %v753
        %797 = vmatprep.subr.mxu0 0.0
        %798 = vmatpush1.msra.mxu0 %v752
        %799 = vmatprep.subr.mxu0 0.0
        %800 = vmatpush1.msra.mxu0 %v751
        %801 = vmatprep.subr.mxu0 0.0
        %802 = vmatpush1.msra.mxu0 %v750
        %803 = vmatprep.subr.mxu0 0.0
        %804 = vmatpush1.msra.mxu0 %v749
        %805 = vmatprep.subr.mxu0 0.0
        %806 = vmatpush2.msra.mxu0 0.0
        %807 = vmatprep.subr.mxu0 0.0
        %808 = vmatpush2.msra.mxu0 0.0
        %809 = vmatprep.subr.mxu0 0.0
        %810 = vmatpush2.msra.mxu0 0.0
        %811 = vmatprep.subr.mxu0 0.0
        %812 = vmatpush2.msra.mxu0 0.0
        %813 = vmatprep.subr.mxu0 0.0
        %814 = vmatpush2.msra.mxu0 0.0
        %815 = vmatprep.subr.mxu0 0.0
        %816 = vmatpush2.msra.mxu0 0.0
        %817 = vmatprep.subr.mxu0 0.0
        %818 = vmatpush2.msra.mxu0 0.0
        %819 = vmatprep.subr.mxu0 0.0
        %820 = vmatpush2.msra.mxu0 0.0
        %821 = vmatprep.subr.mxu0 0.0
        %822 = vmatpush2.msra.mxu0 0.0
        %823 = vmatprep.subr.mxu0 0.0
        %824 = vmatpush2.msra.mxu0 0.0
        %825 = vmatprep.subr.mxu0 0.0
        %826 = vmatpush2.msra.mxu0 0.0
        %827 = vmatprep.subr.mxu0 0.0
        %828 = vmatpush2.msra.mxu0 0.0
        %829 = vmatprep.subr.mxu0 0.0
        %830 = vmatpush2.msra.mxu0 0.0
        %831 = vmatprep.subr.mxu0 0.0
        %832 = vmatpush2.msra.mxu0 0.0
        %833 = vmatprep.subr.mxu0 0.0
        %834 = vmatpush2.msra.mxu0 0.0
        %835 = vmatprep.subr.mxu0 0.0
        %836 = vmatpush2.msra.mxu0 0.0
        %837 = vmatprep.mubr.f32.mxu0 0.0
        %838 = vmatmul.mubr.f32.gmra.mxu0 %v732
        %v839 = vpop.f32.mrf.mxu0
        %v840 = vadd.f32 %v771, %v839
        %v841 = vpop.f32.mrf.mxu0
        %842 = vmatprep.mubr.f32.mxu0 0.0
        %843 = vmatmul.mubr.f32.gmra.mxu0 %v733
        %v844 = vpop.f32.mrf.mxu0
        %v845 = vadd.f32 %v771, %v844
        %v846 = vpop.f32.mrf.mxu0
        %847 = vmatprep.mubr.f32.mxu0 0.0
        %848 = vmatmul.mubr.f32.gmra.mxu0 %v734
        %v849 = vpop.f32.mrf.mxu0
        %v850 = vadd.f32 %v771, %v849
        %v851 = vpop.f32.mrf.mxu0
        %852 = vmatprep.mubr.f32.mxu0 0.0
        %853 = vmatmul.mubr.f32.gmra.mxu0 %v735
        %v854 = vpop.f32.mrf.mxu0
        %v855 = vadd.f32 %v771, %v854
        %v856 = vpop.f32.mrf.mxu0
        %857 = vmatprep.mubr.f32.mxu0 0.0
        %858 = vmatmul.mubr.f32.gmra.mxu0 %v736
        %v859 = vpop.f32.mrf.mxu0
        %v860 = vadd.f32 %v771, %v859
        %v861 = vpop.f32.mrf.mxu0
        %862 = vmatprep.mubr.f32.mxu0 0.0
        %863 = vmatmul.mubr.f32.gmra.mxu0 %v737
        %v864 = vpop.f32.mrf.mxu0
        %v865 = vadd.f32 %v771, %v864
        %v866 = vpop.f32.mrf.mxu0
        %867 = vmatprep.mubr.f32.mxu0 0.0
        %868 = vmatmul.mubr.f32.gmra.mxu0 %v738
        %v869 = vpop.f32.mrf.mxu0
        %v870 = vadd.f32 %v771, %v869
        %v871 = vpop.f32.mrf.mxu0
        %872 = vmatprep.mubr.f32.mxu0 0.0
        %873 = vmatmul.mubr.f32.gmra.mxu0 %v739
        %v874 = vpop.f32.mrf.mxu0
        %v875 = vadd.f32 %v771, %v874
        %v876 = vpop.f32.mrf.mxu0
        %877 = vmatprep.mubr.f32.mxu0 0.0
        %878 = vmatmul.mubr.f32.gmra.mxu0 %v740
        %v879 = vpop.f32.mrf.mxu0
        %v880 = vadd.f32 %v771, %v879
        %v881 = vpop.f32.mrf.mxu0
        %882 = vmatprep.mubr.f32.mxu0 0.0
        %883 = vmatmul.mubr.f32.gmra.mxu0 %v741
        %v884 = vpop.f32.mrf.mxu0
        %v885 = vadd.f32 %v771, %v884
        %v886 = vpop.f32.mrf.mxu0
        %887 = vmatprep.mubr.f32.mxu0 0.0
        %888 = vmatmul.mubr.f32.gmra.mxu0 %v742
        %v889 = vpop.f32.mrf.mxu0
        %v890 = vadd.f32 %v771, %v889
        %v891 = vpop.f32.mrf.mxu0
        %892 = vmatprep.mubr.f32.mxu0 0.0
        %893 = vmatmul.mubr.f32.gmra.mxu0 %v743
        %v894 = vpop.f32.mrf.mxu0
        %v895 = vadd.f32 %v771, %v894
        %v896 = vpop.f32.mrf.mxu0
        %897 = vmatprep.mubr.f32.mxu0 0.0
        %898 = vmatmul.mubr.f32.gmra.mxu0 %v744
        %v899 = vpop.f32.mrf.mxu0
        %v900 = vadd.f32 %v771, %v899
        %v901 = vpop.f32.mrf.mxu0
        %902 = vmatprep.mubr.f32.mxu0 0.0
        %903 = vmatmul.mubr.f32.gmra.mxu0 %v745
        %v904 = vpop.f32.mrf.mxu0
        %v905 = vadd.f32 %v771, %v904
        %v906 = vpop.f32.mrf.mxu0
        %907 = vmatprep.mubr.f32.mxu0 0.0
        %908 = vmatmul.mubr.f32.gmra.mxu0 %v746
        %v909 = vpop.f32.mrf.mxu0
        %v910 = vadd.f32 %v771, %v909
        %v911 = vpop.f32.mrf.mxu0
        %912 = vmatprep.mubr.f32.mxu0 0.0
        %913 = vmatmul.mubr.f32.gmra.mxu0 %v747
        %v914 = vpop.f32.mrf.mxu0
        %v915 = vadd.f32 %v771, %v914
        %v916 = vpop.f32.mrf.mxu0
        %917 = vdwg.mxu0
        %s918 = scalar_lea.vmem [#allocation7], 384
        %v919 = vld [vmem:[%s918] sm:$0xff]
        %v920 = vld [vmem:[%s918 + $0x8] sm:$0xff]
        %v921 = vld [vmem:[%s918 + $0x10] sm:$0xff]
        %v922 = vld [vmem:[%s918 + $0x18] sm:$0xff]
        %v923 = vld [vmem:[%s918 + $0x20] sm:$0xff]
        %v924 = vld [vmem:[%s918 + $0x28] sm:$0xff]
        %v925 = vld [vmem:[%s918 + $0x30] sm:$0xff]
        %v926 = vld [vmem:[%s918 + $0x38] sm:$0xff]
        %v927 = vld [vmem:[%s918 + $0x40] sm:$0xff]
        %v928 = vld [vmem:[%s918 + $0x48] sm:$0xff]
        %v929 = vld [vmem:[%s918 + $0x50] sm:$0xff]
        %v930 = vld [vmem:[%s918 + $0x58] sm:$0xff]
        %v931 = vld [vmem:[%s918 + $0x60] sm:$0xff]
        %v932 = vld [vmem:[%s918 + $0x68] sm:$0xff]
        %v933 = vld [vmem:[%s918 + $0x70] sm:$0xff]
        %v934 = vld [vmem:[%s918 + $0x78] sm:$0xff]
        %s935 = scalar_lea.vmem [#allocation8], 3
        %v936 = vld [vmem:[%s935] sm:$0x1]
        %v938 = vlaneseq
        %v939 = vshrl.u32 %v938, 7
        %v940 = vsub.s32 0, %v939
        %v941 = vrot.slane %v936, %v940
        %943 = vmatprep.subr.mxu0 0.0
        %944 = vmatpush1.msra.mxu0 %v934
        %945 = vmatprep.subr.mxu0 0.0
        %946 = vmatpush1.msra.mxu0 %v933
        %947 = vmatprep.subr.mxu0 0.0
        %948 = vmatpush1.msra.mxu0 %v932
        %949 = vmatprep.subr.mxu0 0.0
        %950 = vmatpush1.msra.mxu0 %v931
        %951 = vmatprep.subr.mxu0 0.0
        %952 = vmatpush1.msra.mxu0 %v930
        %953 = vmatprep.subr.mxu0 0.0
        %954 = vmatpush1.msra.mxu0 %v929
        %955 = vmatprep.subr.mxu0 0.0
        %956 = vmatpush1.msra.mxu0 %v928
        %957 = vmatprep.subr.mxu0 0.0
        %958 = vmatpush1.msra.mxu0 %v927
        %959 = vmatprep.subr.mxu0 0.0
        %960 = vmatpush1.msra.mxu0 %v926
        %961 = vmatprep.subr.mxu0 0.0
        %962 = vmatpush1.msra.mxu0 %v925
        %963 = vmatprep.subr.mxu0 0.0
        %964 = vmatpush1.msra.mxu0 %v924
        %965 = vmatprep.subr.mxu0 0.0
        %966 = vmatpush1.msra.mxu0 %v923
        %967 = vmatprep.subr.mxu0 0.0
        %968 = vmatpush1.msra.mxu0 %v922
        %969 = vmatprep.subr.mxu0 0.0
        %970 = vmatpush1.msra.mxu0 %v921
        %971 = vmatprep.subr.mxu0 0.0
        %972 = vmatpush1.msra.mxu0 %v920
        %973 = vmatprep.subr.mxu0 0.0
        %974 = vmatpush1.msra.mxu0 %v919
        %975 = vmatprep.subr.mxu0 0.0
        %976 = vmatpush2.msra.mxu0 0.0
        %977 = vmatprep.subr.mxu0 0.0
        %978 = vmatpush2.msra.mxu0 0.0
        %979 = vmatprep.subr.mxu0 0.0
        %980 = vmatpush2.msra.mxu0 0.0
        %981 = vmatprep.subr.mxu0 0.0
        %982 = vmatpush2.msra.mxu0 0.0
        %983 = vmatprep.subr.mxu0 0.0
        %984 = vmatpush2.msra.mxu0 0.0
        %985 = vmatprep.subr.mxu0 0.0
        %986 = vmatpush2.msra.mxu0 0.0
        %987 = vmatprep.subr.mxu0 0.0
        %988 = vmatpush2.msra.mxu0 0.0
        %989 = vmatprep.subr.mxu0 0.0
        %990 = vmatpush2.msra.mxu0 0.0
        %991 = vmatprep.subr.mxu0 0.0
        %992 = vmatpush2.msra.mxu0 0.0
        %993 = vmatprep.subr.mxu0 0.0
        %994 = vmatpush2.msra.mxu0 0.0
        %995 = vmatprep.subr.mxu0 0.0
        %996 = vmatpush2.msra.mxu0 0.0
        %997 = vmatprep.subr.mxu0 0.0
        %998 = vmatpush2.msra.mxu0 0.0
        %999 = vmatprep.subr.mxu0 0.0
        %1000 = vmatpush2.msra.mxu0 0.0
        %1001 = vmatprep.subr.mxu0 0.0
        %1002 = vmatpush2.msra.mxu0 0.0
        %1003 = vmatprep.subr.mxu0 0.0
        %1004 = vmatpush2.msra.mxu0 0.0
        %1005 = vmatprep.subr.mxu0 0.0
        %1006 = vmatpush2.msra.mxu0 0.0
        %1007 = vmatprep.mubr.f32.mxu0 0.0
        %1008 = vmatmul.mubr.f32.gmra.mxu0 %v732
        %v1009 = vpop.f32.mrf.mxu0
        %v1010 = vadd.f32 %v941, %v1009
        %v1011 = vpop.f32.mrf.mxu0
        %1012 = vmatprep.mubr.f32.mxu0 0.0
        %1013 = vmatmul.mubr.f32.gmra.mxu0 %v733
        %v1014 = vpop.f32.mrf.mxu0
        %v1015 = vadd.f32 %v941, %v1014
        %v1016 = vpop.f32.mrf.mxu0
        %1017 = vmatprep.mubr.f32.mxu0 0.0
        %1018 = vmatmul.mubr.f32.gmra.mxu0 %v734
        %v1019 = vpop.f32.mrf.mxu0
        %v1020 = vadd.f32 %v941, %v1019
        %v1021 = vpop.f32.mrf.mxu0
        %1022 = vmatprep.mubr.f32.mxu0 0.0
        %1023 = vmatmul.mubr.f32.gmra.mxu0 %v735
        %v1024 = vpop.f32.mrf.mxu0
        %v1025 = vadd.f32 %v941, %v1024
        %v1026 = vpop.f32.mrf.mxu0
        %1027 = vmatprep.mubr.f32.mxu0 0.0
        %1028 = vmatmul.mubr.f32.gmra.mxu0 %v736
        %v1029 = vpop.f32.mrf.mxu0
        %v1030 = vadd.f32 %v941, %v1029
        %v1031 = vpop.f32.mrf.mxu0
        %1032 = vmatprep.mubr.f32.mxu0 0.0
        %1033 = vmatmul.mubr.f32.gmra.mxu0 %v737
        %v1034 = vpop.f32.mrf.mxu0
        %v1035 = vadd.f32 %v941, %v1034
        %v1036 = vpop.f32.mrf.mxu0
        %1037 = vmatprep.mubr.f32.mxu0 0.0
        %1038 = vmatmul.mubr.f32.gmra.mxu0 %v738
        %v1039 = vpop.f32.mrf.mxu0
        %v1040 = vadd.f32 %v941, %v1039
        %v1041 = vpop.f32.mrf.mxu0
        %1042 = vmatprep.mubr.f32.mxu0 0.0
        %1043 = vmatmul.mubr.f32.gmra.mxu0 %v739
        %v1044 = vpop.f32.mrf.mxu0
        %v1045 = vadd.f32 %v941, %v1044
        %v1046 = vpop.f32.mrf.mxu0
        %1047 = vmatprep.mubr.f32.mxu0 0.0
        %1048 = vmatmul.mubr.f32.gmra.mxu0 %v740
        %v1049 = vpop.f32.mrf.mxu0
        %v1050 = vadd.f32 %v941, %v1049
        %v1051 = vpop.f32.mrf.mxu0
        %1052 = vmatprep.mubr.f32.mxu0 0.0
        %1053 = vmatmul.mubr.f32.gmra.mxu0 %v741
        %v1054 = vpop.f32.mrf.mxu0
        %v1055 = vadd.f32 %v941, %v1054
        %v1056 = vpop.f32.mrf.mxu0
        %1057 = vmatprep.mubr.f32.mxu0 0.0
        %1058 = vmatmul.mubr.f32.gmra.mxu0 %v742
        %v1059 = vpop.f32.mrf.mxu0
        %v1060 = vadd.f32 %v941, %v1059
        %v1061 = vpop.f32.mrf.mxu0
        %1062 = vmatprep.mubr.f32.mxu0 0.0
        %1063 = vmatmul.mubr.f32.gmra.mxu0 %v743
        %v1064 = vpop.f32.mrf.mxu0
        %v1065 = vadd.f32 %v941, %v1064
        %v1066 = vpop.f32.mrf.mxu0
        %1067 = vmatprep.mubr.f32.mxu0 0.0
        %1068 = vmatmul.mubr.f32.gmra.mxu0 %v744
        %v1069 = vpop.f32.mrf.mxu0
        %v1070 = vadd.f32 %v941, %v1069
        %v1071 = vpop.f32.mrf.mxu0
        %1072 = vmatprep.mubr.f32.mxu0 0.0
        %1073 = vmatmul.mubr.f32.gmra.mxu0 %v745
        %v1074 = vpop.f32.mrf.mxu0
        %v1075 = vadd.f32 %v941, %v1074
        %v1076 = vpop.f32.mrf.mxu0
        %1077 = vmatprep.mubr.f32.mxu0 0.0
        %1078 = vmatmul.mubr.f32.gmra.mxu0 %v746
        %v1079 = vpop.f32.mrf.mxu0
        %v1080 = vadd.f32 %v941, %v1079
        %v1081 = vpop.f32.mrf.mxu0
        %1082 = vmatprep.mubr.f32.mxu0 0.0
        %1083 = vmatmul.mubr.f32.gmra.mxu0 %v747
        %v1084 = vpop.f32.mrf.mxu0
        %v1085 = vadd.f32 %v941, %v1084
        %v1086 = vpop.f32.mrf.mxu0
        %1087 = vdwg.mxu0
        %1088 = vst [vmem:[%s349] sm:$0xff] %v840
        %1089 = vst [vmem:[%s349 + $0x8] sm:$0xff] %v845
        %1090 = vst [vmem:[%s349 + $0x10] sm:$0xff] %v850
        %1091 = vst [vmem:[%s349 + $0x18] sm:$0xff] %v855
        %1092 = vst [vmem:[%s349 + $0x20] sm:$0xff] %v860
        %1093 = vst [vmem:[%s349 + $0x28] sm:$0xff] %v865
        %1094 = vst [vmem:[%s349 + $0x30] sm:$0xff] %v870
        %1095 = vst [vmem:[%s349 + $0x38] sm:$0xff] %v875
        %1096 = vst [vmem:[%s349 + $0x40] sm:$0xff] %v880
        %1097 = vst [vmem:[%s349 + $0x48] sm:$0xff] %v885
        %1098 = vst [vmem:[%s349 + $0x50] sm:$0xff] %v890
        %1099 = vst [vmem:[%s349 + $0x58] sm:$0xff] %v895
        %1100 = vst [vmem:[%s349 + $0x60] sm:$0xff] %v900
        %1101 = vst [vmem:[%s349 + $0x68] sm:$0xff] %v905
        %1102 = vst [vmem:[%s349 + $0x70] sm:$0xff] %v910
        %1103 = vst [vmem:[%s349 + $0x78] sm:$0xff] %v915
        %1104 = vst [vmem:[%s356] sm:$0xff] %v1010
        %1105 = vst [vmem:[%s356 + $0x8] sm:$0xff] %v1015
        %1106 = vst [vmem:[%s356 + $0x10] sm:$0xff] %v1020
        %1107 = vst [vmem:[%s356 + $0x18] sm:$0xff] %v1025
        %1108 = vst [vmem:[%s356 + $0x20] sm:$0xff] %v1030
        %1109 = vst [vmem:[%s356 + $0x28] sm:$0xff] %v1035
        %1110 = vst [vmem:[%s356 + $0x30] sm:$0xff] %v1040
        %1111 = vst [vmem:[%s356 + $0x38] sm:$0xff] %v1045
        %1112 = vst [vmem:[%s356 + $0x40] sm:$0xff] %v1050
        %1113 = vst [vmem:[%s356 + $0x48] sm:$0xff] %v1055
        %1114 = vst [vmem:[%s356 + $0x50] sm:$0xff] %v1060
        %1115 = vst [vmem:[%s356 + $0x58] sm:$0xff] %v1065
        %1116 = vst [vmem:[%s356 + $0x60] sm:$0xff] %v1070
        %1117 = vst [vmem:[%s356 + $0x68] sm:$0xff] %v1075
        %1118 = vst [vmem:[%s356 + $0x70] sm:$0xff] %v1080
        %1119 = vst [vmem:[%s356 + $0x78] sm:$0xff] %v1085
        %v1120 = vld [vmem:[%s305] sm:$0xff]
        %v1121 = vld [vmem:[%s305 + $0x8] sm:$0xff]
        %v1122 = vld [vmem:[%s305 + $0x10] sm:$0xff]
        %v1123 = vld [vmem:[%s305 + $0x18] sm:$0xff]
        %v1124 = vld [vmem:[%s305 + $0x20] sm:$0xff]
        %v1125 = vld [vmem:[%s305 + $0x28] sm:$0xff]
        %v1126 = vld [vmem:[%s305 + $0x30] sm:$0xff]
        %v1127 = vld [vmem:[%s305 + $0x38] sm:$0xff]
        %v1128 = vld [vmem:[%s305 + $0x40] sm:$0xff]
        %v1129 = vld [vmem:[%s305 + $0x48] sm:$0xff]
        %v1130 = vld [vmem:[%s305 + $0x50] sm:$0xff]
        %v1131 = vld [vmem:[%s305 + $0x58] sm:$0xff]
        %v1132 = vld [vmem:[%s305 + $0x60] sm:$0xff]
        %v1133 = vld [vmem:[%s305 + $0x68] sm:$0xff]
        %v1134 = vld [vmem:[%s305 + $0x70] sm:$0xff]
        %v1135 = vld [vmem:[%s305 + $0x78] sm:$0xff]
        %v1136 = vmul.f32 %v1010, 0.5
        %v1137 = vmul.f32 %v1015, 0.5
        %v1138 = vmul.f32 %v1020, 0.5
        %v1139 = vmul.f32 %v1025, 0.5
        %v1140 = vmul.f32 %v1030, 0.5
        %v1141 = vmul.f32 %v1035, 0.5
        %v1142 = vmul.f32 %v1040, 0.5
        %v1143 = vmul.f32 %v1045, 0.5
        %v1144 = vmul.f32 %v1050, 0.5
        %v1145 = vmul.f32 %v1055, 0.5
        %v1146 = vmul.f32 %v1060, 0.5
        %v1147 = vmul.f32 %v1065, 0.5
        %v1148 = vmul.f32 %v1070, 0.5
        %v1149 = vmul.f32 %v1075, 0.5
        %v1150 = vmul.f32 %v1080, 0.5
        %v1151 = vmul.f32 %v1085, 0.5
        %v1152 = vmul.f32 %v1136, 1.442695
        %v1153 = vpow.pop %v1152
        %v1154 = vmul.f32 %v1137, 1.442695
        %v1155 = vpow.pop %v1154
        %v1156 = vmul.f32 %v1138, 1.442695
        %v1157 = vpow.pop %v1156
        %v1158 = vmul.f32 %v1139, 1.442695
        %v1159 = vpow.pop %v1158
        %v1160 = vmul.f32 %v1140, 1.442695
        %v1161 = vpow.pop %v1160
        %v1162 = vmul.f32 %v1141, 1.442695
        %v1163 = vpow.pop %v1162
        %v1164 = vmul.f32 %v1142, 1.442695
        %v1165 = vpow.pop %v1164
        %v1166 = vmul.f32 %v1143, 1.442695
        %v1167 = vpow.pop %v1166
        %v1168 = vmul.f32 %v1144, 1.442695
        %v1169 = vpow.pop %v1168
        %v1170 = vmul.f32 %v1145, 1.442695
        %v1171 = vpow.pop %v1170
        %v1172 = vmul.f32 %v1146, 1.442695
        %v1173 = vpow.pop %v1172
        %v1174 = vmul.f32 %v1147, 1.442695
        %v1175 = vpow.pop %v1174
        %v1176 = vmul.f32 %v1148, 1.442695
        %v1177 = vpow.pop %v1176
        %v1178 = vmul.f32 %v1149, 1.442695
        %v1179 = vpow.pop %v1178
        %v1180 = vmul.f32 %v1150, 1.442695
        %v1181 = vpow.pop %v1180
        %v1182 = vmul.f32 %v1151, 1.442695
        %v1183 = vpow.pop %v1182
        %v1184 = vmul.f32 %v1120, %v1153
        %v1185 = vmul.f32 %v1121, %v1155
        %v1186 = vmul.f32 %v1122, %v1157
        %v1187 = vmul.f32 %v1123, %v1159
        %v1188 = vmul.f32 %v1124, %v1161
        %v1189 = vmul.f32 %v1125, %v1163
        %v1190 = vmul.f32 %v1126, %v1165
        %v1191 = vmul.f32 %v1127, %v1167
        %v1192 = vmul.f32 %v1128, %v1169
        %v1193 = vmul.f32 %v1129, %v1171
        %v1194 = vmul.f32 %v1130, %v1173
        %v1195 = vmul.f32 %v1131, %v1175
        %v1196 = vmul.f32 %v1132, %v1177
        %v1197 = vmul.f32 %v1133, %v1179
        %v1198 = vmul.f32 %v1134, %v1181
        %v1199 = vmul.f32 %v1135, %v1183
        %v1200 = vadd.f32 %v1184, %v840
        %v1201 = vadd.f32 %v1185, %v845
        %v1202 = vadd.f32 %v1186, %v850
        %v1203 = vadd.f32 %v1187, %v855
        %v1204 = vadd.f32 %v1188, %v860
        %v1205 = vadd.f32 %v1189, %v865
        %v1206 = vadd.f32 %v1190, %v870
        %v1207 = vadd.f32 %v1191, %v875
        %v1208 = vadd.f32 %v1192, %v880
        %v1209 = vadd.f32 %v1193, %v885
        %v1210 = vadd.f32 %v1194, %v890
        %v1211 = vadd.f32 %v1195, %v895
        %v1212 = vadd.f32 %v1196, %v900
        %v1213 = vadd.f32 %v1197, %v905
        %v1214 = vadd.f32 %v1198, %v910
        %v1215 = vadd.f32 %v1199, %v915
        %s1216 = scalar_lea.vmem [#allocation7], 512
        %v1217 = vld [vmem:[%s1216] sm:$0xff]
        %v1218 = vld [vmem:[%s1216 + $0x8] sm:$0xff]
        %v1219 = vld [vmem:[%s1216 + $0x10] sm:$0xff]
        %v1220 = vld [vmem:[%s1216 + $0x18] sm:$0xff]
        %v1221 = vld [vmem:[%s1216 + $0x20] sm:$0xff]
        %v1222 = vld [vmem:[%s1216 + $0x28] sm:$0xff]
        %v1223 = vld [vmem:[%s1216 + $0x30] sm:$0xff]
        %v1224 = vld [vmem:[%s1216 + $0x38] sm:$0xff]
        %v1225 = vld [vmem:[%s1216 + $0x40] sm:$0xff]
        %v1226 = vld [vmem:[%s1216 + $0x48] sm:$0xff]
        %v1227 = vld [vmem:[%s1216 + $0x50] sm:$0xff]
        %v1228 = vld [vmem:[%s1216 + $0x58] sm:$0xff]
        %v1229 = vld [vmem:[%s1216 + $0x60] sm:$0xff]
        %v1230 = vld [vmem:[%s1216 + $0x68] sm:$0xff]
        %v1231 = vld [vmem:[%s1216 + $0x70] sm:$0xff]
        %v1232 = vld [vmem:[%s1216 + $0x78] sm:$0xff]
        %s1233 = scalar_lea.vmem [#allocation8], 4
        %v1234 = vld [vmem:[%s1233] sm:$0x1]
        %v1236 = vlaneseq
        %v1237 = vshrl.u32 %v1236, 7
        %v1238 = vsub.s32 0, %v1237
        %v1239 = vrot.slane %v1234, %v1238
        %1241 = vmatprep.subr.mxu0 0.0
        %1242 = vmatpush1.msra.mxu0 %v1232
        %1243 = vmatprep.subr.mxu0 0.0
        %1244 = vmatpush1.msra.mxu0 %v1231
        %1245 = vmatprep.subr.mxu0 0.0
        %1246 = vmatpush1.msra.mxu0 %v1230
        %1247 = vmatprep.subr.mxu0 0.0
        %1248 = vmatpush1.msra.mxu0 %v1229
        %1249 = vmatprep.subr.mxu0 0.0
        %1250 = vmatpush1.msra.mxu0 %v1228
        %1251 = vmatprep.subr.mxu0 0.0
        %1252 = vmatpush1.msra.mxu0 %v1227
        %1253 = vmatprep.subr.mxu0 0.0
        %1254 = vmatpush1.msra.mxu0 %v1226
        %1255 = vmatprep.subr.mxu0 0.0
        %1256 = vmatpush1.msra.mxu0 %v1225
        %1257 = vmatprep.subr.mxu0 0.0
        %1258 = vmatpush1.msra.mxu0 %v1224
        %1259 = vmatprep.subr.mxu0 0.0
        %1260 = vmatpush1.msra.mxu0 %v1223
        %1261 = vmatprep.subr.mxu0 0.0
        %1262 = vmatpush1.msra.mxu0 %v1222
        %1263 = vmatprep.subr.mxu0 0.0
        %1264 = vmatpush1.msra.mxu0 %v1221
        %1265 = vmatprep.subr.mxu0 0.0
        %1266 = vmatpush1.msra.mxu0 %v1220
        %1267 = vmatprep.subr.mxu0 0.0
        %1268 = vmatpush1.msra.mxu0 %v1219
        %1269 = vmatprep.subr.mxu0 0.0
        %1270 = vmatpush1.msra.mxu0 %v1218
        %1271 = vmatprep.subr.mxu0 0.0
        %1272 = vmatpush1.msra.mxu0 %v1217
        %1273 = vmatprep.subr.mxu0 0.0
        %1274 = vmatpush2.msra.mxu0 0.0
        %1275 = vmatprep.subr.mxu0 0.0
        %1276 = vmatpush2.msra.mxu0 0.0
        %1277 = vmatprep.subr.mxu0 0.0
        %1278 = vmatpush2.msra.mxu0 0.0
        %1279 = vmatprep.subr.mxu0 0.0
        %1280 = vmatpush2.msra.mxu0 0.0
        %1281 = vmatprep.subr.mxu0 0.0
        %1282 = vmatpush2.msra.mxu0 0.0
        %1283 = vmatprep.subr.mxu0 0.0
        %1284 = vmatpush2.msra.mxu0 0.0
        %1285 = vmatprep.subr.mxu0 0.0
        %1286 = vmatpush2.msra.mxu0 0.0
        %1287 = vmatprep.subr.mxu0 0.0
        %1288 = vmatpush2.msra.mxu0 0.0
        %1289 = vmatprep.subr.mxu0 0.0
        %1290 = vmatpush2.msra.mxu0 0.0
        %1291 = vmatprep.subr.mxu0 0.0
        %1292 = vmatpush2.msra.mxu0 0.0
        %1293 = vmatprep.subr.mxu0 0.0
        %1294 = vmatpush2.msra.mxu0 0.0
        %1295 = vmatprep.subr.mxu0 0.0
        %1296 = vmatpush2.msra.mxu0 0.0
        %1297 = vmatprep.subr.mxu0 0.0
        %1298 = vmatpush2.msra.mxu0 0.0
        %1299 = vmatprep.subr.mxu0 0.0
        %1300 = vmatpush2.msra.mxu0 0.0
        %1301 = vmatprep.subr.mxu0 0.0
        %1302 = vmatpush2.msra.mxu0 0.0
        %1303 = vmatprep.subr.mxu0 0.0
        %1304 = vmatpush2.msra.mxu0 0.0
        %1305 = vmatprep.mubr.f32.mxu0 0.0
        %1306 = vmatmul.mubr.f32.gmra.mxu0 %v1200
        %v1307 = vpop.f32.mrf.mxu0
        %v1308 = vadd.f32 %v1239, %v1307
        %v1309 = vpop.f32.mrf.mxu0
        %1310 = vmatprep.mubr.f32.mxu0 0.0
        %1311 = vmatmul.mubr.f32.gmra.mxu0 %v1201
        %v1312 = vpop.f32.mrf.mxu0
        %v1313 = vadd.f32 %v1239, %v1312
        %v1314 = vpop.f32.mrf.mxu0
        %1315 = vmatprep.mubr.f32.mxu0 0.0
        %1316 = vmatmul.mubr.f32.gmra.mxu0 %v1202
        %v1317 = vpop.f32.mrf.mxu0
        %v1318 = vadd.f32 %v1239, %v1317
        %v1319 = vpop.f32.mrf.mxu0
        %1320 = vmatprep.mubr.f32.mxu0 0.0
        %1321 = vmatmul.mubr.f32.gmra.mxu0 %v1203
        %v1322 = vpop.f32.mrf.mxu0
        %v1323 = vadd.f32 %v1239, %v1322
        %v1324 = vpop.f32.mrf.mxu0
        %1325 = vmatprep.mubr.f32.mxu0 0.0
        %1326 = vmatmul.mubr.f32.gmra.mxu0 %v1204
        %v1327 = vpop.f32.mrf.mxu0
        %v1328 = vadd.f32 %v1239, %v1327
        %v1329 = vpop.f32.mrf.mxu0
        %1330 = vmatprep.mubr.f32.mxu0 0.0
        %1331 = vmatmul.mubr.f32.gmra.mxu0 %v1205
        %v1332 = vpop.f32.mrf.mxu0
        %v1333 = vadd.f32 %v1239, %v1332
        %v1334 = vpop.f32.mrf.mxu0
        %1335 = vmatprep.mubr.f32.mxu0 0.0
        %1336 = vmatmul.mubr.f32.gmra.mxu0 %v1206
        %v1337 = vpop.f32.mrf.mxu0
        %v1338 = vadd.f32 %v1239, %v1337
        %v1339 = vpop.f32.mrf.mxu0
        %1340 = vmatprep.mubr.f32.mxu0 0.0
        %1341 = vmatmul.mubr.f32.gmra.mxu0 %v1207
        %v1342 = vpop.f32.mrf.mxu0
        %v1343 = vadd.f32 %v1239, %v1342
        %v1344 = vpop.f32.mrf.mxu0
        %1345 = vmatprep.mubr.f32.mxu0 0.0
        %1346 = vmatmul.mubr.f32.gmra.mxu0 %v1208
        %v1347 = vpop.f32.mrf.mxu0
        %v1348 = vadd.f32 %v1239, %v1347
        %v1349 = vpop.f32.mrf.mxu0
        %1350 = vmatprep.mubr.f32.mxu0 0.0
        %1351 = vmatmul.mubr.f32.gmra.mxu0 %v1209
        %v1352 = vpop.f32.mrf.mxu0
        %v1353 = vadd.f32 %v1239, %v1352
        %v1354 = vpop.f32.mrf.mxu0
        %1355 = vmatprep.mubr.f32.mxu0 0.0
        %1356 = vmatmul.mubr.f32.gmra.mxu0 %v1210
        %v1357 = vpop.f32.mrf.mxu0
        %v1358 = vadd.f32 %v1239, %v1357
        %v1359 = vpop.f32.mrf.mxu0
        %1360 = vmatprep.mubr.f32.mxu0 0.0
        %1361 = vmatmul.mubr.f32.gmra.mxu0 %v1211
        %v1362 = vpop.f32.mrf.mxu0
        %v1363 = vadd.f32 %v1239, %v1362
        %v1364 = vpop.f32.mrf.mxu0
        %1365 = vmatprep.mubr.f32.mxu0 0.0
        %1366 = vmatmul.mubr.f32.gmra.mxu0 %v1212
        %v1367 = vpop.f32.mrf.mxu0
        %v1368 = vadd.f32 %v1239, %v1367
        %v1369 = vpop.f32.mrf.mxu0
        %1370 = vmatprep.mubr.f32.mxu0 0.0
        %1371 = vmatmul.mubr.f32.gmra.mxu0 %v1213
        %v1372 = vpop.f32.mrf.mxu0
        %v1373 = vadd.f32 %v1239, %v1372
        %v1374 = vpop.f32.mrf.mxu0
        %1375 = vmatprep.mubr.f32.mxu0 0.0
        %1376 = vmatmul.mubr.f32.gmra.mxu0 %v1214
        %v1377 = vpop.f32.mrf.mxu0
        %v1378 = vadd.f32 %v1239, %v1377
        %v1379 = vpop.f32.mrf.mxu0
        %1380 = vmatprep.mubr.f32.mxu0 0.0
        %1381 = vmatmul.mubr.f32.gmra.mxu0 %v1215
        %v1382 = vpop.f32.mrf.mxu0
        %v1383 = vadd.f32 %v1239, %v1382
        %v1384 = vpop.f32.mrf.mxu0
        %1385 = vdwg.mxu0
        %v1386 = vmax.f32 %v1308, 0.0
        %v1387 = vmax.f32 %v1313, 0.0
        %v1388 = vmax.f32 %v1318, 0.0
        %v1389 = vmax.f32 %v1323, 0.0
        %v1390 = vmax.f32 %v1328, 0.0
        %v1391 = vmax.f32 %v1333, 0.0
        %v1392 = vmax.f32 %v1338, 0.0
        %v1393 = vmax.f32 %v1343, 0.0
        %v1394 = vmax.f32 %v1348, 0.0
        %v1395 = vmax.f32 %v1353, 0.0
        %v1396 = vmax.f32 %v1358, 0.0
        %v1397 = vmax.f32 %v1363, 0.0
        %v1398 = vmax.f32 %v1368, 0.0
        %v1399 = vmax.f32 %v1373, 0.0
        %v1400 = vmax.f32 %v1378, 0.0
        %v1401 = vmax.f32 %v1383, 0.0
        %s1402 = scalar_lea.vmem [#allocation7], 640
        %v1403 = vld [vmem:[%s1402] sm:$0xff]
        %v1404 = vld [vmem:[%s1402 + $0x8] sm:$0xff]
        %v1405 = vld [vmem:[%s1402 + $0x10] sm:$0xff]
        %v1406 = vld [vmem:[%s1402 + $0x18] sm:$0xff]
        %v1407 = vld [vmem:[%s1402 + $0x20] sm:$0xff]
        %v1408 = vld [vmem:[%s1402 + $0x28] sm:$0xff]
        %v1409 = vld [vmem:[%s1402 + $0x30] sm:$0xff]
        %v1410 = vld [vmem:[%s1402 + $0x38] sm:$0xff]
        %v1411 = vld [vmem:[%s1402 + $0x40] sm:$0xff]
        %v1412 = vld [vmem:[%s1402 + $0x48] sm:$0xff]
        %v1413 = vld [vmem:[%s1402 + $0x50] sm:$0xff]
        %v1414 = vld [vmem:[%s1402 + $0x58] sm:$0xff]
        %v1415 = vld [vmem:[%s1402 + $0x60] sm:$0xff]
        %v1416 = vld [vmem:[%s1402 + $0x68] sm:$0xff]
        %v1417 = vld [vmem:[%s1402 + $0x70] sm:$0xff]
        %v1418 = vld [vmem:[%s1402 + $0x78] sm:$0xff]
        %s1419 = scalar_lea.vmem [#allocation8], 5
        %v1420 = vld [vmem:[%s1419] sm:$0x1]
        %v1422 = vlaneseq
        %v1423 = vshrl.u32 %v1422, 7
        %v1424 = vsub.s32 0, %v1423
        %v1425 = vrot.slane %v1420, %v1424
        %1427 = vmatprep.subr.mxu0 0.0
        %1428 = vmatpush1.msra.mxu0 %v1418
        %1429 = vmatprep.subr.mxu0 0.0
        %1430 = vmatpush1.msra.mxu0 %v1417
        %1431 = vmatprep.subr.mxu0 0.0
        %1432 = vmatpush1.msra.mxu0 %v1416
        %1433 = vmatprep.subr.mxu0 0.0
        %1434 = vmatpush1.msra.mxu0 %v1415
        %1435 = vmatprep.subr.mxu0 0.0
        %1436 = vmatpush1.msra.mxu0 %v1414
        %1437 = vmatprep.subr.mxu0 0.0
        %1438 = vmatpush1.msra.mxu0 %v1413
        %1439 = vmatprep.subr.mxu0 0.0
        %1440 = vmatpush1.msra.mxu0 %v1412
        %1441 = vmatprep.subr.mxu0 0.0
        %1442 = vmatpush1.msra.mxu0 %v1411
        %1443 = vmatprep.subr.mxu0 0.0
        %1444 = vmatpush1.msra.mxu0 %v1410
        %1445 = vmatprep.subr.mxu0 0.0
        %1446 = vmatpush1.msra.mxu0 %v1409
        %1447 = vmatprep.subr.mxu0 0.0
        %1448 = vmatpush1.msra.mxu0 %v1408
        %1449 = vmatprep.subr.mxu0 0.0
        %1450 = vmatpush1.msra.mxu0 %v1407
        %1451 = vmatprep.subr.mxu0 0.0
        %1452 = vmatpush1.msra.mxu0 %v1406
        %1453 = vmatprep.subr.mxu0 0.0
        %1454 = vmatpush1.msra.mxu0 %v1405
        %1455 = vmatprep.subr.mxu0 0.0
        %1456 = vmatpush1.msra.mxu0 %v1404
        %1457 = vmatprep.subr.mxu0 0.0
        %1458 = vmatpush1.msra.mxu0 %v1403
        %1459 = vmatprep.subr.mxu0 0.0
        %1460 = vmatpush2.msra.mxu0 0.0
        %1461 = vmatprep.subr.mxu0 0.0
        %1462 = vmatpush2.msra.mxu0 0.0
        %1463 = vmatprep.subr.mxu0 0.0
        %1464 = vmatpush2.msra.mxu0 0.0
        %1465 = vmatprep.subr.mxu0 0.0
        %1466 = vmatpush2.msra.mxu0 0.0
        %1467 = vmatprep.subr.mxu0 0.0
        %1468 = vmatpush2.msra.mxu0 0.0
        %1469 = vmatprep.subr.mxu0 0.0
        %1470 = vmatpush2.msra.mxu0 0.0
        %1471 = vmatprep.subr.mxu0 0.0
        %1472 = vmatpush2.msra.mxu0 0.0
        %1473 = vmatprep.subr.mxu0 0.0
        %1474 = vmatpush2.msra.mxu0 0.0
        %1475 = vmatprep.subr.mxu0 0.0
        %1476 = vmatpush2.msra.mxu0 0.0
        %1477 = vmatprep.subr.mxu0 0.0
        %1478 = vmatpush2.msra.mxu0 0.0
        %1479 = vmatprep.subr.mxu0 0.0
        %1480 = vmatpush2.msra.mxu0 0.0
        %1481 = vmatprep.subr.mxu0 0.0
        %1482 = vmatpush2.msra.mxu0 0.0
        %1483 = vmatprep.subr.mxu0 0.0
        %1484 = vmatpush2.msra.mxu0 0.0
        %1485 = vmatprep.subr.mxu0 0.0
        %1486 = vmatpush2.msra.mxu0 0.0
        %1487 = vmatprep.subr.mxu0 0.0
        %1488 = vmatpush2.msra.mxu0 0.0
        %1489 = vmatprep.subr.mxu0 0.0
        %1490 = vmatpush2.msra.mxu0 0.0
        %1491 = vmatprep.mubr.f32.mxu0 0.0
        %1492 = vmatmul.mubr.f32.gmra.mxu0 %v1386
        %v1493 = vpop.f32.mrf.mxu0
        %v1494 = vadd.f32 %v1425, %v1493
        %v1495 = vpop.f32.mrf.mxu0
        %1496 = vmatprep.mubr.f32.mxu0 0.0
        %1497 = vmatmul.mubr.f32.gmra.mxu0 %v1387
        %v1498 = vpop.f32.mrf.mxu0
        %v1499 = vadd.f32 %v1425, %v1498
        %v1500 = vpop.f32.mrf.mxu0
        %1501 = vmatprep.mubr.f32.mxu0 0.0
        %1502 = vmatmul.mubr.f32.gmra.mxu0 %v1388
        %v1503 = vpop.f32.mrf.mxu0
        %v1504 = vadd.f32 %v1425, %v1503
        %v1505 = vpop.f32.mrf.mxu0
        %1506 = vmatprep.mubr.f32.mxu0 0.0
        %1507 = vmatmul.mubr.f32.gmra.mxu0 %v1389
        %v1508 = vpop.f32.mrf.mxu0
        %v1509 = vadd.f32 %v1425, %v1508
        %v1510 = vpop.f32.mrf.mxu0
        %1511 = vmatprep.mubr.f32.mxu0 0.0
        %1512 = vmatmul.mubr.f32.gmra.mxu0 %v1390
        %v1513 = vpop.f32.mrf.mxu0
        %v1514 = vadd.f32 %v1425, %v1513
        %v1515 = vpop.f32.mrf.mxu0
        %1516 = vmatprep.mubr.f32.mxu0 0.0
        %1517 = vmatmul.mubr.f32.gmra.mxu0 %v1391
        %v1518 = vpop.f32.mrf.mxu0
        %v1519 = vadd.f32 %v1425, %v1518
        %v1520 = vpop.f32.mrf.mxu0
        %1521 = vmatprep.mubr.f32.mxu0 0.0
        %1522 = vmatmul.mubr.f32.gmra.mxu0 %v1392
        %v1523 = vpop.f32.mrf.mxu0
        %v1524 = vadd.f32 %v1425, %v1523
        %v1525 = vpop.f32.mrf.mxu0
        %1526 = vmatprep.mubr.f32.mxu0 0.0
        %1527 = vmatmul.mubr.f32.gmra.mxu0 %v1393
        %v1528 = vpop.f32.mrf.mxu0
        %v1529 = vadd.f32 %v1425, %v1528
        %v1530 = vpop.f32.mrf.mxu0
        %1531 = vmatprep.mubr.f32.mxu0 0.0
        %1532 = vmatmul.mubr.f32.gmra.mxu0 %v1394
        %v1533 = vpop.f32.mrf.mxu0
        %v1534 = vadd.f32 %v1425, %v1533
        %v1535 = vpop.f32.mrf.mxu0
        %1536 = vmatprep.mubr.f32.mxu0 0.0
        %1537 = vmatmul.mubr.f32.gmra.mxu0 %v1395
        %v1538 = vpop.f32.mrf.mxu0
        %v1539 = vadd.f32 %v1425, %v1538
        %v1540 = vpop.f32.mrf.mxu0
        %1541 = vmatprep.mubr.f32.mxu0 0.0
        %1542 = vmatmul.mubr.f32.gmra.mxu0 %v1396
        %v1543 = vpop.f32.mrf.mxu0
        %v1544 = vadd.f32 %v1425, %v1543
        %v1545 = vpop.f32.mrf.mxu0
        %1546 = vmatprep.mubr.f32.mxu0 0.0
        %1547 = vmatmul.mubr.f32.gmra.mxu0 %v1397
        %v1548 = vpop.f32.mrf.mxu0
        %v1549 = vadd.f32 %v1425, %v1548
        %v1550 = vpop.f32.mrf.mxu0
        %1551 = vmatprep.mubr.f32.mxu0 0.0
        %1552 = vmatmul.mubr.f32.gmra.mxu0 %v1398
        %v1553 = vpop.f32.mrf.mxu0
        %v1554 = vadd.f32 %v1425, %v1553
        %v1555 = vpop.f32.mrf.mxu0
        %1556 = vmatprep.mubr.f32.mxu0 0.0
        %1557 = vmatmul.mubr.f32.gmra.mxu0 %v1399
        %v1558 = vpop.f32.mrf.mxu0
        %v1559 = vadd.f32 %v1425, %v1558
        %v1560 = vpop.f32.mrf.mxu0
        %1561 = vmatprep.mubr.f32.mxu0 0.0
        %1562 = vmatmul.mubr.f32.gmra.mxu0 %v1400
        %v1563 = vpop.f32.mrf.mxu0
        %v1564 = vadd.f32 %v1425, %v1563
        %v1565 = vpop.f32.mrf.mxu0
        %1566 = vmatprep.mubr.f32.mxu0 0.0
        %1567 = vmatmul.mubr.f32.gmra.mxu0 %v1401
        %v1568 = vpop.f32.mrf.mxu0
        %v1569 = vadd.f32 %v1425, %v1568
        %v1570 = vpop.f32.mrf.mxu0
        %1571 = vdwg.mxu0
        %v1572 = vmax.f32 %v1494, 0.0
        %v1573 = vmax.f32 %v1499, 0.0
        %v1574 = vmax.f32 %v1504, 0.0
        %v1575 = vmax.f32 %v1509, 0.0
        %v1576 = vmax.f32 %v1514, 0.0
        %v1577 = vmax.f32 %v1519, 0.0
        %v1578 = vmax.f32 %v1524, 0.0
        %v1579 = vmax.f32 %v1529, 0.0
        %v1580 = vmax.f32 %v1534, 0.0
        %v1581 = vmax.f32 %v1539, 0.0
        %v1582 = vmax.f32 %v1544, 0.0
        %v1583 = vmax.f32 %v1549, 0.0
        %v1584 = vmax.f32 %v1554, 0.0
        %v1585 = vmax.f32 %v1559, 0.0
        %v1586 = vmax.f32 %v1564, 0.0
        %v1587 = vmax.f32 %v1569, 0.0
        %s1588 = scalar_lea.vmem [#allocation7], 768
        %v1589 = vld [vmem:[%s1588] sm:$0xff]
        %v1590 = vld [vmem:[%s1588 + $0x8] sm:$0xff]
        %v1591 = vld [vmem:[%s1588 + $0x10] sm:$0xff]
        %v1592 = vld [vmem:[%s1588 + $0x18] sm:$0xff]
        %v1593 = vld [vmem:[%s1588 + $0x20] sm:$0xff]
        %v1594 = vld [vmem:[%s1588 + $0x28] sm:$0xff]
        %v1595 = vld [vmem:[%s1588 + $0x30] sm:$0xff]
        %v1596 = vld [vmem:[%s1588 + $0x38] sm:$0xff]
        %v1597 = vld [vmem:[%s1588 + $0x40] sm:$0xff]
        %v1598 = vld [vmem:[%s1588 + $0x48] sm:$0xff]
        %v1599 = vld [vmem:[%s1588 + $0x50] sm:$0xff]
        %v1600 = vld [vmem:[%s1588 + $0x58] sm:$0xff]
        %v1601 = vld [vmem:[%s1588 + $0x60] sm:$0xff]
        %v1602 = vld [vmem:[%s1588 + $0x68] sm:$0xff]
        %v1603 = vld [vmem:[%s1588 + $0x70] sm:$0xff]
        %v1604 = vld [vmem:[%s1588 + $0x78] sm:$0xff]
        %s1605 = scalar_lea.vmem [#allocation8], 6
        %v1606 = vld [vmem:[%s1605] sm:$0x1]
        %v1608 = vlaneseq
        %v1609 = vshrl.u32 %v1608, 7
        %v1610 = vsub.s32 0, %v1609
        %v1611 = vrot.slane %v1606, %v1610
        %1613 = vmatprep.subr.mxu0 0.0
        %1614 = vmatpush1.msra.mxu0 %v1604
        %1615 = vmatprep.subr.mxu0 0.0
        %1616 = vmatpush1.msra.mxu0 %v1603
        %1617 = vmatprep.subr.mxu0 0.0
        %1618 = vmatpush1.msra.mxu0 %v1602
        %1619 = vmatprep.subr.mxu0 0.0
        %1620 = vmatpush1.msra.mxu0 %v1601
        %1621 = vmatprep.subr.mxu0 0.0
        %1622 = vmatpush1.msra.mxu0 %v1600
        %1623 = vmatprep.subr.mxu0 0.0
        %1624 = vmatpush1.msra.mxu0 %v1599
        %1625 = vmatprep.subr.mxu0 0.0
        %1626 = vmatpush1.msra.mxu0 %v1598
        %1627 = vmatprep.subr.mxu0 0.0
        %1628 = vmatpush1.msra.mxu0 %v1597
        %1629 = vmatprep.subr.mxu0 0.0
        %1630 = vmatpush1.msra.mxu0 %v1596
        %1631 = vmatprep.subr.mxu0 0.0
        %1632 = vmatpush1.msra.mxu0 %v1595
        %1633 = vmatprep.subr.mxu0 0.0
        %1634 = vmatpush1.msra.mxu0 %v1594
        %1635 = vmatprep.subr.mxu0 0.0
        %1636 = vmatpush1.msra.mxu0 %v1593
        %1637 = vmatprep.subr.mxu0 0.0
        %1638 = vmatpush1.msra.mxu0 %v1592
        %1639 = vmatprep.subr.mxu0 0.0
        %1640 = vmatpush1.msra.mxu0 %v1591
        %1641 = vmatprep.subr.mxu0 0.0
        %1642 = vmatpush1.msra.mxu0 %v1590
        %1643 = vmatprep.subr.mxu0 0.0
        %1644 = vmatpush1.msra.mxu0 %v1589
        %1645 = vmatprep.subr.mxu0 0.0
        %1646 = vmatpush2.msra.mxu0 0.0
        %1647 = vmatprep.subr.mxu0 0.0
        %1648 = vmatpush2.msra.mxu0 0.0
        %1649 = vmatprep.subr.mxu0 0.0
        %1650 = vmatpush2.msra.mxu0 0.0
        %1651 = vmatprep.subr.mxu0 0.0
        %1652 = vmatpush2.msra.mxu0 0.0
        %1653 = vmatprep.subr.mxu0 0.0
        %1654 = vmatpush2.msra.mxu0 0.0
        %1655 = vmatprep.subr.mxu0 0.0
        %1656 = vmatpush2.msra.mxu0 0.0
        %1657 = vmatprep.subr.mxu0 0.0
        %1658 = vmatpush2.msra.mxu0 0.0
        %1659 = vmatprep.subr.mxu0 0.0
        %1660 = vmatpush2.msra.mxu0 0.0
        %1661 = vmatprep.subr.mxu0 0.0
        %1662 = vmatpush2.msra.mxu0 0.0
        %1663 = vmatprep.subr.mxu0 0.0
        %1664 = vmatpush2.msra.mxu0 0.0
        %1665 = vmatprep.subr.mxu0 0.0
        %1666 = vmatpush2.msra.mxu0 0.0
        %1667 = vmatprep.subr.mxu0 0.0
        %1668 = vmatpush2.msra.mxu0 0.0
        %1669 = vmatprep.subr.mxu0 0.0
        %1670 = vmatpush2.msra.mxu0 0.0
        %1671 = vmatprep.subr.mxu0 0.0
        %1672 = vmatpush2.msra.mxu0 0.0
        %1673 = vmatprep.subr.mxu0 0.0
        %1674 = vmatpush2.msra.mxu0 0.0
        %1675 = vmatprep.subr.mxu0 0.0
        %1676 = vmatpush2.msra.mxu0 0.0
        %1677 = vmatprep.mubr.f32.mxu0 0.0
        %1678 = vmatmul.mubr.f32.gmra.mxu0 %v1572
        %v1679 = vpop.f32.mrf.mxu0
        %v1680 = vadd.f32 %v1611, %v1679
        %v1681 = vpop.f32.mrf.mxu0
        %1682 = vmatprep.mubr.f32.mxu0 0.0
        %1683 = vmatmul.mubr.f32.gmra.mxu0 %v1573
        %v1684 = vpop.f32.mrf.mxu0
        %v1685 = vadd.f32 %v1611, %v1684
        %v1686 = vpop.f32.mrf.mxu0
        %1687 = vmatprep.mubr.f32.mxu0 0.0
        %1688 = vmatmul.mubr.f32.gmra.mxu0 %v1574
        %v1689 = vpop.f32.mrf.mxu0
        %v1690 = vadd.f32 %v1611, %v1689
        %v1691 = vpop.f32.mrf.mxu0
        %1692 = vmatprep.mubr.f32.mxu0 0.0
        %1693 = vmatmul.mubr.f32.gmra.mxu0 %v1575
        %v1694 = vpop.f32.mrf.mxu0
        %v1695 = vadd.f32 %v1611, %v1694
        %v1696 = vpop.f32.mrf.mxu0
        %1697 = vmatprep.mubr.f32.mxu0 0.0
        %1698 = vmatmul.mubr.f32.gmra.mxu0 %v1576
        %v1699 = vpop.f32.mrf.mxu0
        %v1700 = vadd.f32 %v1611, %v1699
        %v1701 = vpop.f32.mrf.mxu0
        %1702 = vmatprep.mubr.f32.mxu0 0.0
        %1703 = vmatmul.mubr.f32.gmra.mxu0 %v1577
        %v1704 = vpop.f32.mrf.mxu0
        %v1705 = vadd.f32 %v1611, %v1704
        %v1706 = vpop.f32.mrf.mxu0
        %1707 = vmatprep.mubr.f32.mxu0 0.0
        %1708 = vmatmul.mubr.f32.gmra.mxu0 %v1578
        %v1709 = vpop.f32.mrf.mxu0
        %v1710 = vadd.f32 %v1611, %v1709
        %v1711 = vpop.f32.mrf.mxu0
        %1712 = vmatprep.mubr.f32.mxu0 0.0
        %1713 = vmatmul.mubr.f32.gmra.mxu0 %v1579
        %v1714 = vpop.f32.mrf.mxu0
        %v1715 = vadd.f32 %v1611, %v1714
        %v1716 = vpop.f32.mrf.mxu0
        %1717 = vmatprep.mubr.f32.mxu0 0.0
        %1718 = vmatmul.mubr.f32.gmra.mxu0 %v1580
        %v1719 = vpop.f32.mrf.mxu0
        %v1720 = vadd.f32 %v1611, %v1719
        %v1721 = vpop.f32.mrf.mxu0
        %1722 = vmatprep.mubr.f32.mxu0 0.0
        %1723 = vmatmul.mubr.f32.gmra.mxu0 %v1581
        %v1724 = vpop.f32.mrf.mxu0
        %v1725 = vadd.f32 %v1611, %v1724
        %v1726 = vpop.f32.mrf.mxu0
        %1727 = vmatprep.mubr.f32.mxu0 0.0
        %1728 = vmatmul.mubr.f32.gmra.mxu0 %v1582
        %v1729 = vpop.f32.mrf.mxu0
        %v1730 = vadd.f32 %v1611, %v1729
        %v1731 = vpop.f32.mrf.mxu0
        %1732 = vmatprep.mubr.f32.mxu0 0.0
        %1733 = vmatmul.mubr.f32.gmra.mxu0 %v1583
        %v1734 = vpop.f32.mrf.mxu0
        %v1735 = vadd.f32 %v1611, %v1734
        %v1736 = vpop.f32.mrf.mxu0
        %1737 = vmatprep.mubr.f32.mxu0 0.0
        %1738 = vmatmul.mubr.f32.gmra.mxu0 %v1584
        %v1739 = vpop.f32.mrf.mxu0
        %v1740 = vadd.f32 %v1611, %v1739
        %v1741 = vpop.f32.mrf.mxu0
        %1742 = vmatprep.mubr.f32.mxu0 0.0
        %1743 = vmatmul.mubr.f32.gmra.mxu0 %v1585
        %v1744 = vpop.f32.mrf.mxu0
        %v1745 = vadd.f32 %v1611, %v1744
        %v1746 = vpop.f32.mrf.mxu0
        %1747 = vmatprep.mubr.f32.mxu0 0.0
        %1748 = vmatmul.mubr.f32.gmra.mxu0 %v1586
        %v1749 = vpop.f32.mrf.mxu0
        %v1750 = vadd.f32 %v1611, %v1749
        %v1751 = vpop.f32.mrf.mxu0
        %1752 = vmatprep.mubr.f32.mxu0 0.0
        %1753 = vmatmul.mubr.f32.gmra.mxu0 %v1587
        %v1754 = vpop.f32.mrf.mxu0
        %v1755 = vadd.f32 %v1611, %v1754
        %v1756 = vpop.f32.mrf.mxu0
        %1757 = vdwg.mxu0
        %1758 = vst [vmem:[%s342] sm:$0xff] %v1680
        %1759 = vst [vmem:[%s342 + $0x8] sm:$0xff] %v1685
        %1760 = vst [vmem:[%s342 + $0x10] sm:$0xff] %v1690
        %1761 = vst [vmem:[%s342 + $0x18] sm:$0xff] %v1695
        %1762 = vst [vmem:[%s342 + $0x20] sm:$0xff] %v1700
        %1763 = vst [vmem:[%s342 + $0x28] sm:$0xff] %v1705
        %1764 = vst [vmem:[%s342 + $0x30] sm:$0xff] %v1710
        %1765 = vst [vmem:[%s342 + $0x38] sm:$0xff] %v1715
        %1766 = vst [vmem:[%s342 + $0x40] sm:$0xff] %v1720
        %1767 = vst [vmem:[%s342 + $0x48] sm:$0xff] %v1725
        %1768 = vst [vmem:[%s342 + $0x50] sm:$0xff] %v1730
        %1769 = vst [vmem:[%s342 + $0x58] sm:$0xff] %v1735
        %1770 = vst [vmem:[%s342 + $0x60] sm:$0xff] %v1740
        %1771 = vst [vmem:[%s342 + $0x68] sm:$0xff] %v1745
        %1772 = vst [vmem:[%s342 + $0x70] sm:$0xff] %v1750
        %1773 = vst [vmem:[%s342 + $0x78] sm:$0xff] %v1755
        %s1774 = sand.u32 %s133, 1
        %s1775 = scalar_lea.sflag [#allocation4], %s1774
        %s1776 = sand.u32 %s133, 1
        %s1777 = smul.addr %s1776, 128
        %s1778 = scalar_lea.vmem [#allocation10], %s1777
        %s1779 = sand.u32 %s31, 1
        %s1780 = scalar_lea.sflag [#allocation12], %s1779
        %s1781 = sand.u32 %s159, 1
        %s1782 = smul.addr %s1781, 128
        %s1783 = scalar_lea.vmem [#allocation11], %s1782
        %s1784 = sand.u32 %s31, 1
        %s1785 = scalar_lea.sflag [#allocation12], %s1784
        %s1786 = sand.u32 %s185, 1
        %s1787 = smul.addr %s1786, 128
        %s1788 = scalar_lea.vmem [#allocation13], %s1787
        // Predicated region
        $region53: #{tpu_custom_call.1} parent=35 // pred_check
          %p1789 = pneg %p143
        $region54: #{tpu_custom_call.1} parent=35 // pred_check_branch
          %1791 = sbr.rel (%p1789) target = $region56
        $region55: #{tpu_custom_call.1} parent=35 // pred_region
          %s1792 = smul.u32 16, %s31
          %s1794 = ssub.s32 2048, 2048
          %1795 = vsyncadd %s1775, %s1794
          %s1796 = smul.addr %s1792, 128
          %s1797 = scalar_lea.hbm %s4, %s1796
          %s1798 = sshll.u32 %s1778, 4
          %s1799 = int_to_ptr.vmem [resolvable:$true] %s1798
          %1804 = dma.vmem_to_hbm [thread:$0]  %s1799, 2048, %s1797, %s1775, 128, 128, 8
        $region56: #{tpu_custom_call.1} parent=35 // pred_fallthru
          _
        // Predicated region
        $region57: #{tpu_custom_call.1} parent=35 // pred_check
          %p1805 = pneg %p169
        $region58: #{tpu_custom_call.1} parent=35 // pred_check_branch
          %1807 = sbr.rel (%p1805) target = $region60
        $region59: #{tpu_custom_call.1} parent=35 // pred_region
          %s1808 = smul.u32 16, %s31
          %s1810 = ssub.s32 2048, 2048
          %1811 = vsyncadd %s1780, %s1810
          %s1812 = smul.addr %s1808, 128
          %s1813 = scalar_lea.hbm %s5, %s1812
          %s1814 = sshll.u32 %s1783, 4
          %s1815 = int_to_ptr.vmem [resolvable:$true] %s1814
          %1820 = dma.vmem_to_hbm [thread:$0]  %s1815, 2048, %s1813, %s1780, 128, 128, 8
        $region60: #{tpu_custom_call.1} parent=35 // pred_fallthru
          _
        // Predicated region
        $region61: #{tpu_custom_call.1} parent=35 // pred_check
          %p1821 = pneg %p195
        $region62: #{tpu_custom_call.1} parent=35 // pred_check_branch
          %1823 = sbr.rel (%p1821) target = $region64
        $region63: #{tpu_custom_call.1} parent=35 // pred_region
          %s1824 = smul.u32 16, %s31
          %s1826 = ssub.s32 2048, 2048
          %1827 = vsyncadd %s1785, %s1826
          %s1828 = smul.addr %s1824, 128
          %s1829 = scalar_lea.hbm %s6, %s1828
          %s1830 = sshll.u32 %s1788, 4
          %s1831 = int_to_ptr.vmem [resolvable:$true] %s1830
          %1836 = dma.vmem_to_hbm [thread:$0]  %s1831, 2048, %s1829, %s1785, 128, 128, 8
        $region64: #{tpu_custom_call.1} parent=35 // pred_fallthru
          _
      $region36: #{tpu_custom_call.1} parent=5 // pred_fallthru
        _
      %p1837 = scmp.le.s32.totalorder 2, %s26
      // Predicated region
      $region65: #{tpu_custom_call.1} parent=5 // pred_check
        %p1838 = pneg %p1837
      $region66: #{tpu_custom_call.1} parent=5 // pred_check_branch
        %1840 = sbr.rel (%p1838) target = $region68
      $region67: #{tpu_custom_call.1} parent=5 // pred_region
        %s1841 = ssub.s32 %s26, 2
        // Predicated region
        $region69: #{tpu_custom_call.1} parent=67 // pred_check
          %p1842 = pneg %p149
        $region70: #{tpu_custom_call.1} parent=67 // pred_check_branch
          %1844 = sbr.rel (%p1842) target = $region72
        $region71: #{tpu_custom_call.1} parent=67 // pred_region
          %s1845 = sand.u32 %s134, 1
          %s1846 = scalar_lea.sflag [#allocation4], %s1845
          %s1847 = sand.u32 %s134, 1
          %s1848 = smul.addr %s1847, 128
          %s1849 = scalar_lea.vmem [#allocation10], %s1848
          %1850 = dma.done %s1846, 2048
        $region72: #{tpu_custom_call.1} parent=67 // pred_fallthru
          _
        // Predicated region
        $region73: #{tpu_custom_call.1} parent=67 // pred_check
          %p1851 = pneg %p175
        $region74: #{tpu_custom_call.1} parent=67 // pred_check_branch
          %1853 = sbr.rel (%p1851) target = $region76
        $region75: #{tpu_custom_call.1} parent=67 // pred_region
          %s1854 = sand.u32 %s32, 1
          %s1855 = scalar_lea.sflag [#allocation12], %s1854
          %s1856 = sand.u32 %s160, 1
          %s1857 = smul.addr %s1856, 128
          %s1858 = scalar_lea.vmem [#allocation11], %s1857
          %1859 = dma.done %s1855, 2048
        $region76: #{tpu_custom_call.1} parent=67 // pred_fallthru
          _
        // Predicated region
        $region77: #{tpu_custom_call.1} parent=67 // pred_check
          %p1860 = pneg %p201
        $region78: #{tpu_custom_call.1} parent=67 // pred_check_branch
          %1862 = sbr.rel (%p1860) target = $region80
        $region79: #{tpu_custom_call.1} parent=67 // pred_region
          %s1863 = sand.u32 %s32, 1
          %s1864 = scalar_lea.sflag [#allocation12], %s1863
          %s1865 = sand.u32 %s186, 1
          %s1866 = smul.addr %s1865, 128
          %s1867 = scalar_lea.vmem [#allocation13], %s1866
          %1868 = dma.done %s1864, 2048
        $region80: #{tpu_custom_call.1} parent=67 // pred_fallthru
          _
      $region68: #{tpu_custom_call.1} parent=5 // pred_fallthru
        _
    $region6: #{tpu_custom_call.1} parent=1 // loop_footer
      %s30 = sadd.s32 1, %s26
    $region7: #{tpu_custom_call.1} parent=1 // loop_footer_branch
      %25 = sbr.rel target = $region3
    $region8: #{tpu_custom_call.1} parent=1 // loop_exit
      _
    %1869 = vsyncpa [#allocation3], 1
    %s1870 = scalar_lea.sflag [#allocation3], 1
    %1871 = vsyncpa %s1870, 1
    %1872 = vsyncpa [#allocation6], 1
    %s1873 = scalar_lea.sflag [#allocation6], 1
    %1874 = vsyncpa %s1873, 1
    %1875 = vsyncpa [#allocation9], 1
    %1876 = vsyncpa [#allocation4], 1
    %s1877 = scalar_lea.sflag [#allocation4], 1
    %1878 = vsyncpa %s1877, 1
    %1879 = vsyncpa [#allocation12], 1
    %s1880 = scalar_lea.sflag [#allocation12], 1
    %1881 = vsyncpa %s1880, 1

</llo_original>
